<compile_context>
chip_gen: v7x
topology: tpu7x:2x2x1
jax: 0.10.0
libtpu: 0.0.40
codegen_flags: <defaults>
</compile_context>

<pallas_src>
import jax
import jax.numpy as jnp
from jax.experimental import pallas as pl
from jax.experimental.pallas import tpu as pltpu

IN_DIM = 2
H_DIM = 400
OUT_DIM = 2

H_PAD = 512       # 400 -> 512: multiple of 128 lanes, clean on 128/256-wide MXU
OUT_PAD = 128     # 2 -> 128: lane-dense (unmasked) output stores
MAX_TILE_M = 256  # max batch tile; well within VMEM with 2-deep pipelining


def _mlp_kernel(z_ref,
                w1_ref, b1_ref,
                w2_ref, b2_ref,
                w3_ref, b3_ref,
                w4_ref, b4_ref,
                o_ref):
    # Layer 1: K=2 contraction -> two VPU broadcast FMAs (an MXU pass would
    # waste 126/254 of its rows and add push/pop latency).
    z = z_ref[...]                                    # (TILE_M, 2) f32
    w1 = w1_ref[...]                                  # (2, H_PAD) f32
    h = (z[:, 0:1] * w1[0:1, :]
         + z[:, 1:2] * w1[1:2, :]
         + b1_ref[...])                               # (TILE_M, H_PAD) f32
    h = jnp.maximum(h, 0.0)

    # Layers 2-4: bf16 MXU matmuls, f32 accumulation; bias/ReLU in f32 (VPU).
    h = jnp.dot(h.astype(jnp.bfloat16), w2_ref[...],
                preferred_element_type=jnp.float32) + b2_ref[...]
    h = jnp.maximum(h, 0.0)
    h = jnp.dot(h.astype(jnp.bfloat16), w3_ref[...],
                preferred_element_type=jnp.float32) + b3_ref[...]
    h = jnp.maximum(h, 0.0)
    out = jnp.dot(h.astype(jnp.bfloat16), w4_ref[...],
                  preferred_element_type=jnp.float32) + b4_ref[...]
    o_ref[...] = out.astype(o_ref.dtype)


def _pad_and_cast_params(params):
    """Zero-pad to TPU-friendly shapes; large weights -> bf16, w1/biases f32."""
    (w1, b1), (w2, b2), (w3, b3), (w4, b4) = params

    def pad_to(x, shape):
        pads = [(0, t - s) for s, t in zip(x.shape, shape)]
        return jnp.pad(x, pads)  # zero padding (required for equivalence)

    return (
        pad_to(w1, (IN_DIM, H_PAD)).astype(jnp.float32),   # tiny, keep f32
        pad_to(b1, (1, H_PAD)).astype(jnp.float32),
        pad_to(w2, (H_PAD, H_PAD)).astype(jnp.bfloat16),
        pad_to(b2, (1, H_PAD)).astype(jnp.float32),
        pad_to(w3, (H_PAD, H_PAD)).astype(jnp.bfloat16),
        pad_to(b3, (1, H_PAD)).astype(jnp.float32),
        pad_to(w4, (H_PAD, OUT_PAD)).astype(jnp.bfloat16),
        pad_to(b4, (1, OUT_PAD)).astype(jnp.float32),
    )


def generator_forward(z, params):
    """Run the Generator MLP forward pass via a batch-tiled Pallas kernel."""
    batch = z.shape[0]
    padded = _pad_and_cast_params(params)

    # Adaptive batch tile: multiple of 8 sublanes, capped at MAX_TILE_M.
    tile_m = min(MAX_TILE_M, max(8, ((batch + 7) // 8) * 8))
    m_pad = pl.cdiv(batch, tile_m) * tile_m
    z_p = jnp.pad(z.astype(jnp.float32), ((0, m_pad - batch), (0, 0)))
    grid = (m_pad // tile_m,)

    # Weights / biases: constant block index -> VMEM-resident, DMA'd once.
    weight_specs = [pl.BlockSpec(p.shape, lambda i: (0, 0)) for p in padded]

    flops = 2 * m_pad * H_PAD * (IN_DIM + H_PAD + H_PAD + OUT_PAD)
    bytes_accessed = int(sum(p.size * p.dtype.itemsize for p in padded)
                         + m_pad * (IN_DIM + OUT_PAD) * 4)
    cost = pl.CostEstimate(flops=flops, transcendentals=0,
                           bytes_accessed=bytes_accessed)

    out = pl.pallas_call(
        _mlp_kernel,
        out_shape=jax.ShapeDtypeStruct((m_pad, OUT_PAD), jnp.float32),
        grid=grid,
        in_specs=[pl.BlockSpec((tile_m, IN_DIM), lambda i: (i, 0))] + weight_specs,
        out_specs=pl.BlockSpec((tile_m, OUT_PAD), lambda i: (i, 0)),
        compiler_params=pltpu.CompilerParams(
            dimension_semantics=("parallel",)),
        cost_estimate=cost,
    )(z_p, *padded)

    return out[:batch, :OUT_DIM]


def init_params(key):
    """Deterministic init mimicking PyTorch nn.Linear default:
    U(-1/sqrt(fan_in), 1/sqrt(fan_in)) for both weights and biases.
    Weights stored (in_features, out_features), biases as (1, out_features)."""
    dims = [(IN_DIM, H_DIM), (H_DIM, H_DIM), (H_DIM, H_DIM), (H_DIM, OUT_DIM)]
    params = []
    for (fan_in, fan_out) in dims:
        key, kw, kb = jax.random.split(key, 3)
        bound = 1.0 / jnp.sqrt(jnp.float32(fan_in))
        w = jax.random.uniform(kw, (fan_in, fan_out), jnp.float32, -bound, bound)
        b = jax.random.uniform(kb, (1, fan_out), jnp.float32, -bound, bound)
        params.append((w, b))
    return params


def reference_forward(z, params):
    h = z
    for i, (w, b) in enumerate(params):
        h = h @ w + b
        if i < len(params) - 1:
            h = jnp.maximum(h, 0.0)
    return h


if __name__ == "__main__":
    key = jax.random.PRNGKey(0)
    key, zkey = jax.random.split(key)

    batch = 8
    z = jax.random.normal(zkey, (batch, IN_DIM), jnp.float32)

    params = init_params(key)

    out = generator_forward(z, params)
    out = jax.block_until_ready(out)

    # sanity check vs. pure-JAX f32 reference (tolerance loosened for bf16 weights)
    ref = reference_forward(z, params)
    assert out.shape == (batch, OUT_DIM)
    assert jnp.allclose(out, ref, atol=1e-2, rtol=1e-2), "mismatch vs reference"

    print("KERNEL_OK")
</pallas_src>

<mosaic_0001>
module attributes {stable_mosaic.version = 11 : i64} {
  func.func @_mlp_kernel(%arg0: i32, %arg1: memref<8x2xf32, #tpu.memory_space<vmem>>, %arg2: memref<2x512xf32, #tpu.memory_space<vmem>>, %arg3: memref<1x512xf32, #tpu.memory_space<vmem>>, %arg4: memref<512x512xbf16, #tpu.memory_space<vmem>>, %arg5: memref<1x512xf32, #tpu.memory_space<vmem>>, %arg6: memref<512x512xbf16, #tpu.memory_space<vmem>>, %arg7: memref<1x512xf32, #tpu.memory_space<vmem>>, %arg8: memref<512x128xbf16, #tpu.memory_space<vmem>>, %arg9: memref<1x128xf32, #tpu.memory_space<vmem>>, %arg10: memref<8x128xf32, #tpu.memory_space<vmem>>) attributes {dimension_semantics = [#tpu.dimension_semantics<parallel>], iteration_bounds = array<i64: 1>, scalar_prefetch = 0 : i64, scratch_operands = 0 : i64, tpu.core_type = #tpu.core_type<tc>, window_params = [{transform_indices = @transform_0, window_bounds = array<i64: 8, 2>}, {pipeline_mode = #tpu.pipeline_mode<synchronous>, transform_indices = @transform_1, window_bounds = array<i64: 2, 512>}, {pipeline_mode = #tpu.pipeline_mode<synchronous>, transform_indices = @transform_2, window_bounds = array<i64: 1, 512>}, {pipeline_mode = #tpu.pipeline_mode<synchronous>, transform_indices = @transform_3, window_bounds = array<i64: 512, 512>}, {pipeline_mode = #tpu.pipeline_mode<synchronous>, transform_indices = @transform_4, window_bounds = array<i64: 1, 512>}, {pipeline_mode = #tpu.pipeline_mode<synchronous>, transform_indices = @transform_5, window_bounds = array<i64: 512, 512>}, {pipeline_mode = #tpu.pipeline_mode<synchronous>, transform_indices = @transform_6, window_bounds = array<i64: 1, 512>}, {pipeline_mode = #tpu.pipeline_mode<synchronous>, transform_indices = @transform_7, window_bounds = array<i64: 512, 128>}, {pipeline_mode = #tpu.pipeline_mode<synchronous>, transform_indices = @transform_8, window_bounds = array<i64: 1, 128>}, {transform_indices = @transform_9, window_bounds = array<i64: 8, 128>}]} {
    %c0 = arith.constant 0 : index
    %c0_0 = arith.constant 0 : index
    %0 = vector.load %arg1[%c0, %c0_0] : memref<8x2xf32, #tpu.memory_space<vmem>>, vector<8x2xf32>
    %c0_1 = arith.constant 0 : index
    %c0_2 = arith.constant 0 : index
    %1 = vector.load %arg2[%c0_1, %c0_2] : memref<2x512xf32, #tpu.memory_space<vmem>>, vector<2x512xf32>
    %2 = vector.extract_strided_slice %0 {offsets = [0, 0], sizes = [8, 1], strides = [1, 1]} : vector<8x2xf32> to vector<8x1xf32>
    %3 = vector.extract_strided_slice %1 {offsets = [0, 0], sizes = [1, 512], strides = [1, 1]} : vector<2x512xf32> to vector<1x512xf32>
    %4 = vector.broadcast %2 : vector<8x1xf32> to vector<8x512xf32>
    %5 = vector.broadcast %3 : vector<1x512xf32> to vector<8x512xf32>
    %6 = arith.mulf %4, %5 : vector<8x512xf32>
    %7 = vector.extract_strided_slice %0 {offsets = [0, 1], sizes = [8, 1], strides = [1, 1]} : vector<8x2xf32> to vector<8x1xf32>
    %8 = vector.extract_strided_slice %1 {offsets = [1, 0], sizes = [1, 512], strides = [1, 1]} : vector<2x512xf32> to vector<1x512xf32>
    %9 = vector.broadcast %7 : vector<8x1xf32> to vector<8x512xf32>
    %10 = vector.broadcast %8 : vector<1x512xf32> to vector<8x512xf32>
    %11 = arith.mulf %9, %10 : vector<8x512xf32>
    %12 = arith.addf %6, %11 : vector<8x512xf32>
    %c0_3 = arith.constant 0 : index
    %c0_4 = arith.constant 0 : index
    %13 = vector.load %arg3[%c0_3, %c0_4] : memref<1x512xf32, #tpu.memory_space<vmem>>, vector<1x512xf32>
    %14 = vector.broadcast %13 : vector<1x512xf32> to vector<8x512xf32>
    %15 = arith.addf %12, %14 : vector<8x512xf32>
    %cst = arith.constant 0.000000e+00 : f32
    %16 = vector.broadcast %cst : f32 to vector<8x512xf32>
    %17 = arith.maximumf %15, %16 : vector<8x512xf32>
    %18 = arith.truncf %17 : vector<8x512xf32> to vector<8x512xbf16>
    %c0_5 = arith.constant 0 : index
    %c0_6 = arith.constant 0 : index
    %19 = vector.load %arg4[%c0_5, %c0_6] : memref<512x512xbf16, #tpu.memory_space<vmem>>, vector<512x512xbf16>
    %cst_7 = arith.constant dense<0.000000e+00> : vector<8x512xf32>
    %20 = tpu.matmul %18, %19, %cst_7 {dimension_numbers = #tpu.dot_dimension_numbers<[1], [0], [0], [1], [0, 0, 1, 1], [], []>} : vector<8x512xbf16>, vector<512x512xbf16>, vector<8x512xf32> -> vector<8x512xf32>
    %c0_8 = arith.constant 0 : index
    %c0_9 = arith.constant 0 : index
    %21 = vector.load %arg5[%c0_8, %c0_9] : memref<1x512xf32, #tpu.memory_space<vmem>>, vector<1x512xf32>
    %22 = vector.broadcast %21 : vector<1x512xf32> to vector<8x512xf32>
    %23 = arith.addf %20, %22 : vector<8x512xf32>
    %cst_10 = arith.constant 0.000000e+00 : f32
    %24 = vector.broadcast %cst_10 : f32 to vector<8x512xf32>
    %25 = arith.maximumf %23, %24 : vector<8x512xf32>
    %26 = arith.truncf %25 : vector<8x512xf32> to vector<8x512xbf16>
    %c0_11 = arith.constant 0 : index
    %c0_12 = arith.constant 0 : index
    %27 = vector.load %arg6[%c0_11, %c0_12] : memref<512x512xbf16, #tpu.memory_space<vmem>>, vector<512x512xbf16>
    %cst_13 = arith.constant dense<0.000000e+00> : vector<8x512xf32>
    %28 = tpu.matmul %26, %27, %cst_13 {dimension_numbers = #tpu.dot_dimension_numbers<[1], [0], [0], [1], [0, 0, 1, 1], [], []>} : vector<8x512xbf16>, vector<512x512xbf16>, vector<8x512xf32> -> vector<8x512xf32>
    %c0_14 = arith.constant 0 : index
    %c0_15 = arith.constant 0 : index
    %29 = vector.load %arg7[%c0_14, %c0_15] : memref<1x512xf32, #tpu.memory_space<vmem>>, vector<1x512xf32>
    %30 = vector.broadcast %29 : vector<1x512xf32> to vector<8x512xf32>
    %31 = arith.addf %28, %30 : vector<8x512xf32>
    %cst_16 = arith.constant 0.000000e+00 : f32
    %32 = vector.broadcast %cst_16 : f32 to vector<8x512xf32>
    %33 = arith.maximumf %31, %32 : vector<8x512xf32>
    %34 = arith.truncf %33 : vector<8x512xf32> to vector<8x512xbf16>
    %c0_17 = arith.constant 0 : index
    %c0_18 = arith.constant 0 : index
    %35 = vector.load %arg8[%c0_17, %c0_18] : memref<512x128xbf16, #tpu.memory_space<vmem>>, vector<512x128xbf16>
    %cst_19 = arith.constant dense<0.000000e+00> : vector<8x128xf32>
    %36 = tpu.matmul %34, %35, %cst_19 {dimension_numbers = #tpu.dot_dimension_numbers<[1], [0], [0], [1], [0, 0, 1, 1], [], []>} : vector<8x512xbf16>, vector<512x128xbf16>, vector<8x128xf32> -> vector<8x128xf32>
    %c0_20 = arith.constant 0 : index
    %c0_21 = arith.constant 0 : index
    %37 = vector.load %arg9[%c0_20, %c0_21] : memref<1x128xf32, #tpu.memory_space<vmem>>, vector<1x128xf32>
    %38 = vector.broadcast %37 : vector<1x128xf32> to vector<8x128xf32>
    %39 = arith.addf %36, %38 : vector<8x128xf32>
    %c0_22 = arith.constant 0 : index
    %c0_23 = arith.constant 0 : index
    %40 = vector.load %arg10[%c0_22, %c0_23] : memref<8x128xf32, #tpu.memory_space<vmem>>, vector<8x128xf32>
    tpu.vector_store %arg10[%c0_22, %c0_23], %39 {strides = array<i32>} : memref<8x128xf32, #tpu.memory_space<vmem>>, vector<8x128xf32>,
    return
  }
  func.func @transform_0(%arg0: i32) -> (i32, i32) {
    %c0_i32 = arith.constant 0 : i32
    %c0_i32_0 = arith.constant 0 : i32
    return %arg0, %c0_i32 : i32, i32
  }
  func.func @transform_1(%arg0: i32) -> (i32, i32) {
    %c0_i32 = arith.constant 0 : i32
    %c0_i32_0 = arith.constant 0 : i32
    %c0_i32_1 = arith.constant 0 : i32
    return %c0_i32, %c0_i32_0 : i32, i32
  }
  func.func @transform_2(%arg0: i32) -> (i32, i32) {
    %c0_i32 = arith.constant 0 : i32
    %c0_i32_0 = arith.constant 0 : i32
    %c0_i32_1 = arith.constant 0 : i32
    return %c0_i32, %c0_i32_0 : i32, i32
  }
  func.func @transform_3(%arg0: i32) -> (i32, i32) {
    %c0_i32 = arith.constant 0 : i32
    %c0_i32_0 = arith.constant 0 : i32
    %c0_i32_1 = arith.constant 0 : i32
    return %c0_i32, %c0_i32_0 : i32, i32
  }
  func.func @transform_4(%arg0: i32) -> (i32, i32) {
    %c0_i32 = arith.constant 0 : i32
    %c0_i32_0 = arith.constant 0 : i32
    %c0_i32_1 = arith.constant 0 : i32
    return %c0_i32, %c0_i32_0 : i32, i32
  }
  func.func @transform_5(%arg0: i32) -> (i32, i32) {
    %c0_i32 = arith.constant 0 : i32
    %c0_i32_0 = arith.constant 0 : i32
    %c0_i32_1 = arith.constant 0 : i32
    return %c0_i32, %c0_i32_0 : i32, i32
  }
  func.func @transform_6(%arg0: i32) -> (i32, i32) {
    %c0_i32 = arith.constant 0 : i32
    %c0_i32_0 = arith.constant 0 : i32
    %c0_i32_1 = arith.constant 0 : i32
    return %c0_i32, %c0_i32_0 : i32, i32
  }
  func.func @transform_7(%arg0: i32) -> (i32, i32) {
    %c0_i32 = arith.constant 0 : i32
    %c0_i32_0 = arith.constant 0 : i32
    %c0_i32_1 = arith.constant 0 : i32
    return %c0_i32, %c0_i32_0 : i32, i32
  }
  func.func @transform_8(%arg0: i32) -> (i32, i32) {
    %c0_i32 = arith.constant 0 : i32
    %c0_i32_0 = arith.constant 0 : i32
    %c0_i32_1 = arith.constant 0 : i32
    return %c0_i32, %c0_i32_0 : i32, i32
  }
  func.func @transform_9(%arg0: i32) -> (i32, i32) {
    %c0_i32 = arith.constant 0 : i32
    %c0_i32_0 = arith.constant 0 : i32
    return %arg0, %c0_i32 : i32, i32
  }
}

</mosaic_0001>

<llo_original>
// kernel: tpu_custom_call.1
$region0: #{tpu_custom_call.1}
  #allocation0 [shape = 'u32[]', space=smem, size = 0x4, offset = 0x4, fixed_abs, tag = 'smem constant byte address 0x4 - core index']
  #allocation1 [shape = 'u32[144,128]{1,0:T(1,128)}', space=vmem, size = 0x12000, scoped, tag = 'internal scratch']
  %s0 = inlined_call_operand.vmem [shape: f32[8,2], index: 0, kind: input, shape index: {}]
  %s1 = inlined_call_operand.vmem [shape: f32[2,512], index: 1, kind: input, shape index: {}]
  %s2 = inlined_call_operand.vmem [shape: f32[1,512], index: 2, kind: input, shape index: {}]
  %s3 = inlined_call_operand.hbm [shape: bf16[512,512], index: 3, kind: input, shape index: {}]
  %s4 = inlined_call_operand.vmem [shape: f32[1,512], index: 4, kind: input, shape index: {}]
  %s5 = inlined_call_operand.hbm [shape: bf16[512,512], index: 5, kind: input, shape index: {}]
  %s6 = inlined_call_operand.vmem [shape: f32[1,512], index: 6, kind: input, shape index: {}]
  %s7 = inlined_call_operand.hbm [shape: bf16[512,128], index: 7, kind: input, shape index: {}]
  %s8 = inlined_call_operand.vmem [shape: f32[1,128], index: 8, kind: input, shape index: {}]
  %s9 = inlined_call_operand.hbm [shape: f32[8,128], index: 9, kind: output, shape index: {}]
  %s10 = sld [smem:[#allocation0]]
  $region58: #{tpu_custom_call.1} parent=0
    _
  %s12 = ssub.s32 1, %s10
  %s13 = scalar_select 0, %s12, %s10
  $region1: #{tpu_custom_call.1} parent=0
    #allocation2 [shape = 'u8[524288]{0}', space=vmem, size = 0x80000, scoped, tag = 'input window, operand 3, single buffered']
    #allocation3 [shape = 's32[1]{0}', space=sflag, size = 0x4, scoped, tag = 'scoped memory for tpu_custom_call.1']
    #allocation4 [shape = 's32[1]{0}', space=sflag, size = 0x4, scoped, tag = 'scoped memory for tpu_custom_call.1']
    #allocation5 [shape = 'u8[524288]{0}', space=vmem, size = 0x80000, scoped, tag = 'input window, operand 5, single buffered']
    #allocation6 [shape = 's32[1]{0}', space=sflag, size = 0x4, scoped, tag = 'scoped memory for tpu_custom_call.1']
    #allocation7 [shape = 'u8[131072]{0}', space=vmem, size = 0x20000, scoped, tag = 'input window, operand 7, single buffered']
    #allocation8 [shape = 'u8[4096]{0}', space=vmem, size = 0x1000, scoped, tag = 'output window, operand 0, single buffered']
    %14 = vsyncpa [#allocation3], 0
    %15 = vsyncpa [#allocation6], 0
    %16 = vsyncpa [#allocation4], 0
    // Predicated region
    $region2: #{tpu_custom_call.1} parent=1 // pred_check
      _
    $region3: #{tpu_custom_call.1} parent=1 // pred_check_branch
      %18 = sbr.rel (0) target = $region5
    $region4: #{tpu_custom_call.1} parent=1 // pred_region
      _
    $region5: #{tpu_custom_call.1} parent=1 // pred_fallthru
      _
    // Predicated region
    $region6: #{tpu_custom_call.1} parent=1 // pred_check
      _
    $region7: #{tpu_custom_call.1} parent=1 // pred_check_branch
      %20 = sbr.rel (0) target = $region9
    $region8: #{tpu_custom_call.1} parent=1 // pred_region
      _
    $region9: #{tpu_custom_call.1} parent=1 // pred_fallthru
      _
    // Predicated region
    $region10: #{tpu_custom_call.1} parent=1 // pred_check
      _
    $region11: #{tpu_custom_call.1} parent=1 // pred_check_branch
      %22 = sbr.rel (0) target = $region13
    $region12: #{tpu_custom_call.1} parent=1 // pred_region
      _
    $region13: #{tpu_custom_call.1} parent=1 // pred_fallthru
      _
    // Predicated region
    $region14: #{tpu_custom_call.1} parent=1 // pred_check
      _
    $region15: #{tpu_custom_call.1} parent=1 // pred_check_branch
      %24 = sbr.rel (0) target = $region17
    $region16: #{tpu_custom_call.1} parent=1 // pred_region
      %s26 = ssub.s32 16384, 16384
      %27 = vsyncadd [#allocation3], %s26
      %s28 = sshll.u32 [#allocation2], 4
      %s29 = int_to_ptr.vmem [resolvable:$true] %s28
      %34 = dma.hbm_to_vmem [thread:$0]  %s3, 16384, %s29, [#allocation3], 256, 256, 16
    $region17: #{tpu_custom_call.1} parent=1 // pred_fallthru
      _
    // Predicated region
    $region18: #{tpu_custom_call.1} parent=1 // pred_check
      _
    $region19: #{tpu_custom_call.1} parent=1 // pred_check_branch
      %36 = sbr.rel (0) target = $region21
    $region20: #{tpu_custom_call.1} parent=1 // pred_region
      _
    $region21: #{tpu_custom_call.1} parent=1 // pred_fallthru
      _
    // Predicated region
    $region22: #{tpu_custom_call.1} parent=1 // pred_check
      _
    $region23: #{tpu_custom_call.1} parent=1 // pred_check_branch
      %38 = sbr.rel (0) target = $region25
    $region24: #{tpu_custom_call.1} parent=1 // pred_region
      %s40 = ssub.s32 16384, 16384
      %41 = vsyncadd [#allocation6], %s40
      %s42 = sshll.u32 [#allocation5], 4
      %s43 = int_to_ptr.vmem [resolvable:$true] %s42
      %48 = dma.hbm_to_vmem [thread:$0]  %s5, 16384, %s43, [#allocation6], 256, 256, 16
    $region25: #{tpu_custom_call.1} parent=1 // pred_fallthru
      _
    // Predicated region
    $region26: #{tpu_custom_call.1} parent=1 // pred_check
      _
    $region27: #{tpu_custom_call.1} parent=1 // pred_check_branch
      %50 = sbr.rel (0) target = $region29
    $region28: #{tpu_custom_call.1} parent=1 // pred_region
      _
    $region29: #{tpu_custom_call.1} parent=1 // pred_fallthru
      _
    // Predicated region
    $region30: #{tpu_custom_call.1} parent=1 // pred_check
      _
    $region31: #{tpu_custom_call.1} parent=1 // pred_check_branch
      %52 = sbr.rel (0) target = $region33
    $region32: #{tpu_custom_call.1} parent=1 // pred_region
      %s54 = ssub.s32 4096, 4096
      %55 = vsyncadd [#allocation6], %s54
      %s56 = sshll.u32 [#allocation7], 4
      %s57 = int_to_ptr.vmem [resolvable:$true] %s56
      %62 = dma.hbm_to_vmem [thread:$0]  %s7, 4096, %s57, [#allocation6], 64, 64, 4
    $region33: #{tpu_custom_call.1} parent=1 // pred_fallthru
      _
    // Predicated region
    $region34: #{tpu_custom_call.1} parent=1 // pred_check
      _
    $region35: #{tpu_custom_call.1} parent=1 // pred_check_branch
      %64 = sbr.rel (0) target = $region37
    $region36: #{tpu_custom_call.1} parent=1 // pred_region
      _
    $region37: #{tpu_custom_call.1} parent=1 // pred_fallthru
      _
    // Predicated region
    $region38: #{tpu_custom_call.1} parent=1 // pred_check
      _
    $region39: #{tpu_custom_call.1} parent=1 // pred_check_branch
      %66 = sbr.rel (0) target = $region41
    $region40: #{tpu_custom_call.1} parent=1 // pred_region
      %67 = dma.done [#allocation3], 16384
    $region41: #{tpu_custom_call.1} parent=1 // pred_fallthru
      _
    // Predicated region
    $region42: #{tpu_custom_call.1} parent=1 // pred_check
      _
    $region43: #{tpu_custom_call.1} parent=1 // pred_check_branch
      %69 = sbr.rel (0) target = $region45
    $region44: #{tpu_custom_call.1} parent=1 // pred_region
      %70 = dma.done [#allocation6], 16384
    $region45: #{tpu_custom_call.1} parent=1 // pred_fallthru
      _
    // Predicated region
    $region46: #{tpu_custom_call.1} parent=1 // pred_check
      _
    $region47: #{tpu_custom_call.1} parent=1 // pred_check_branch
      %72 = sbr.rel (0) target = $region49
    $region48: #{tpu_custom_call.1} parent=1 // pred_region
      %73 = dma.done [#allocation6], 4096
    $region49: #{tpu_custom_call.1} parent=1 // pred_fallthru
      _
    %v75 = vld [vmem:[%s0] sm:$0xff]
    %v76 = vld [vmem:[%s1] sm:$0xff]
    %78 = vset.pattern.permute.xlu0 0
    %79 = vperm.xlu0 %78, %v75
    %v80 = vpop.permute.xlu0 %79
    %v83 = vlaneseq
    %v84 = vshrl.u32 %v83, 7
    %v85 = vsub.s32 0, %v84
    %v86 = vrot.slane %v76, %v85
    %v87 = vlaneseq
    %v88 = vshrl.u32 %v87, 7
    %v89 = vsub.s32 2, %v88
    %v90 = vrot.slane %v76, %v89
    %v91 = vlaneseq
    %v92 = vshrl.u32 %v91, 7
    %v93 = vsub.s32 4, %v92
    %v94 = vrot.slane %v76, %v93
    %v95 = vlaneseq
    %v96 = vshrl.u32 %v95, 7
    %v97 = vsub.s32 6, %v96
    %v98 = vrot.slane %v76, %v97
    %v103 = vlaneseq
    %v104 = vshrl.u32 %v103, 7
    %v105 = vsub.s32 0, %v104
    %v106 = vrot.slane %v86, %v105
    %v107 = vlaneseq
    %v108 = vshrl.u32 %v107, 7
    %v109 = vsub.s32 0, %v108
    %v110 = vrot.slane %v90, %v109
    %v111 = vlaneseq
    %v112 = vshrl.u32 %v111, 7
    %v113 = vsub.s32 0, %v112
    %v114 = vrot.slane %v94, %v113
    %v115 = vlaneseq
    %v116 = vshrl.u32 %v115, 7
    %v117 = vsub.s32 0, %v116
    %v118 = vrot.slane %v98, %v117
    %v119 = vmul.f32 %v80, %v106
    %v120 = vmul.f32 %v80, %v110
    %v121 = vmul.f32 %v80, %v114
    %v122 = vmul.f32 %v80, %v118
    %123 = vset.pattern.permute.xlu0 1
    %124 = vperm.xlu0 %123, %v75
    %v125 = vpop.permute.xlu0 %124
    %v127 = vlaneseq
    %v128 = vshrl.u32 %v127, 7
    %v129 = vsub.s32 1, %v128
    %v130 = vrot.slane %v76, %v129
    %v131 = vlaneseq
    %v132 = vshrl.u32 %v131, 7
    %v133 = vsub.s32 3, %v132
    %v134 = vrot.slane %v76, %v133
    %v135 = vlaneseq
    %v136 = vshrl.u32 %v135, 7
    %v137 = vsub.s32 5, %v136
    %v138 = vrot.slane %v76, %v137
    %v139 = vlaneseq
    %v140 = vshrl.u32 %v139, 7
    %v141 = vsub.s32 7, %v140
    %v142 = vrot.slane %v76, %v141
    %v147 = vlaneseq
    %v148 = vshrl.u32 %v147, 7
    %v149 = vsub.s32 1, %v148
    %v150 = vrot.slane %v130, %v149
    %v151 = vlaneseq
    %v152 = vshrl.u32 %v151, 7
    %v153 = vsub.s32 1, %v152
    %v154 = vrot.slane %v134, %v153
    %v155 = vlaneseq
    %v156 = vshrl.u32 %v155, 7
    %v157 = vsub.s32 1, %v156
    %v158 = vrot.slane %v138, %v157
    %v159 = vlaneseq
    %v160 = vshrl.u32 %v159, 7
    %v161 = vsub.s32 1, %v160
    %v162 = vrot.slane %v142, %v161
    %v163 = vmul.f32 %v125, %v150
    %v164 = vmul.f32 %v125, %v154
    %v165 = vmul.f32 %v125, %v158
    %v166 = vmul.f32 %v125, %v162
    %v167 = vadd.f32 %v119, %v163
    %v168 = vadd.f32 %v120, %v164
    %v169 = vadd.f32 %v121, %v165
    %v170 = vadd.f32 %v122, %v166
    %v171 = vld [vmem:[%s2] sm:$0xf]
    %v173 = vlaneseq
    %v174 = vshrl.u32 %v173, 7
    %v175 = vsub.s32 0, %v174
    %v176 = vrot.slane %v171, %v175
    %v177 = vlaneseq
    %v178 = vshrl.u32 %v177, 7
    %v179 = vsub.s32 1, %v178
    %v180 = vrot.slane %v171, %v179
    %v181 = vlaneseq
    %v182 = vshrl.u32 %v181, 7
    %v183 = vsub.s32 2, %v182
    %v184 = vrot.slane %v171, %v183
    %v185 = vlaneseq
    %v186 = vshrl.u32 %v185, 7
    %v187 = vsub.s32 3, %v186
    %v188 = vrot.slane %v171, %v187
    %v193 = vadd.f32 %v167, %v176
    %v194 = vadd.f32 %v168, %v180
    %v195 = vadd.f32 %v169, %v184
    %v196 = vadd.f32 %v170, %v188
    %v197 = vmax.f32 %v193, 0.0
    %v198 = vmax.f32 %v194, 0.0
    %v199 = vmax.f32 %v195, 0.0
    %v200 = vmax.f32 %v196, 0.0
    %v201 = vpack.c.bf16 %v197, %v197
    %v202 = vpack.c.bf16 %v198, %v198
    %v203 = vpack.c.bf16 %v199, %v199
    %v204 = vpack.c.bf16 %v200, %v200
    %v205 = vld [vmem:[#allocation2] sm:$0xff]
    %v206 = vld [vmem:[#allocation2 + $0x8] sm:$0xff]
    %v207 = vld [vmem:[#allocation2 + $0x10] sm:$0xff]
    %v208 = vld [vmem:[#allocation2 + $0x18] sm:$0xff]
    %v209 = vld [vmem:[#allocation2 + $0x20] sm:$0xff]
    %v210 = vld [vmem:[#allocation2 + $0x28] sm:$0xff]
    %v211 = vld [vmem:[#allocation2 + $0x30] sm:$0xff]
    %v212 = vld [vmem:[#allocation2 + $0x38] sm:$0xff]
    %v213 = vld [vmem:[#allocation2 + $0x40] sm:$0xff]
    %v214 = vld [vmem:[#allocation2 + $0x48] sm:$0xff]
    %v215 = vld [vmem:[#allocation2 + $0x50] sm:$0xff]
    %v216 = vld [vmem:[#allocation2 + $0x58] sm:$0xff]
    %v217 = vld [vmem:[#allocation2 + $0x60] sm:$0xff]
    %v218 = vld [vmem:[#allocation2 + $0x68] sm:$0xff]
    %v219 = vld [vmem:[#allocation2 + $0x70] sm:$0xff]
    %v220 = vld [vmem:[#allocation2 + $0x78] sm:$0xff]
    %v221 = vld [vmem:[#allocation2 + $0x80] sm:$0xff]
    %v222 = vld [vmem:[#allocation2 + $0x88] sm:$0xff]
    %v223 = vld [vmem:[#allocation2 + $0x90] sm:$0xff]
    %v224 = vld [vmem:[#allocation2 + $0x98] sm:$0xff]
    %v225 = vld [vmem:[#allocation2 + $0xa0] sm:$0xff]
    %v226 = vld [vmem:[#allocation2 + $0xa8] sm:$0xff]
    %v227 = vld [vmem:[#allocation2 + $0xb0] sm:$0xff]
    %v228 = vld [vmem:[#allocation2 + $0xb8] sm:$0xff]
    %v229 = vld [vmem:[#allocation2 + $0xc0] sm:$0xff]
    %v230 = vld [vmem:[#allocation2 + $0xc8] sm:$0xff]
    %v231 = vld [vmem:[#allocation2 + $0xd0] sm:$0xff]
    %v232 = vld [vmem:[#allocation2 + $0xd8] sm:$0xff]
    %v233 = vld [vmem:[#allocation2 + $0xe0] sm:$0xff]
    %v234 = vld [vmem:[#allocation2 + $0xe8] sm:$0xff]
    %v235 = vld [vmem:[#allocation2 + $0xf0] sm:$0xff]
    %v236 = vld [vmem:[#allocation2 + $0xf8] sm:$0xff]
    %v237 = vld [vmem:[#allocation2 + $0x100] sm:$0xff]
    %v238 = vld [vmem:[#allocation2 + $0x108] sm:$0xff]
    %v239 = vld [vmem:[#allocation2 + $0x110] sm:$0xff]
    %v240 = vld [vmem:[#allocation2 + $0x118] sm:$0xff]
    %v241 = vld [vmem:[#allocation2 + $0x120] sm:$0xff]
    %v242 = vld [vmem:[#allocation2 + $0x128] sm:$0xff]
    %v243 = vld [vmem:[#allocation2 + $0x130] sm:$0xff]
    %v244 = vld [vmem:[#allocation2 + $0x138] sm:$0xff]
    %v245 = vld [vmem:[#allocation2 + $0x140] sm:$0xff]
    %v246 = vld [vmem:[#allocation2 + $0x148] sm:$0xff]
    %v247 = vld [vmem:[#allocation2 + $0x150] sm:$0xff]
    %v248 = vld [vmem:[#allocation2 + $0x158] sm:$0xff]
    %v249 = vld [vmem:[#allocation2 + $0x160] sm:$0xff]
    %v250 = vld [vmem:[#allocation2 + $0x168] sm:$0xff]
    %v251 = vld [vmem:[#allocation2 + $0x170] sm:$0xff]
    %v252 = vld [vmem:[#allocation2 + $0x178] sm:$0xff]
    %v253 = vld [vmem:[#allocation2 + $0x180] sm:$0xff]
    %v254 = vld [vmem:[#allocation2 + $0x188] sm:$0xff]
    %v255 = vld [vmem:[#allocation2 + $0x190] sm:$0xff]
    %v256 = vld [vmem:[#allocation2 + $0x198] sm:$0xff]
    %v257 = vld [vmem:[#allocation2 + $0x1a0] sm:$0xff]
    %v258 = vld [vmem:[#allocation2 + $0x1a8] sm:$0xff]
    %v259 = vld [vmem:[#allocation2 + $0x1b0] sm:$0xff]
    %v260 = vld [vmem:[#allocation2 + $0x1b8] sm:$0xff]
    %v261 = vld [vmem:[#allocation2 + $0x1c0] sm:$0xff]
    %v262 = vld [vmem:[#allocation2 + $0x1c8] sm:$0xff]
    %v263 = vld [vmem:[#allocation2 + $0x1d0] sm:$0xff]
    %v264 = vld [vmem:[#allocation2 + $0x1d8] sm:$0xff]
    %v265 = vld [vmem:[#allocation2 + $0x1e0] sm:$0xff]
    %v266 = vld [vmem:[#allocation2 + $0x1e8] sm:$0xff]
    %v267 = vld [vmem:[#allocation2 + $0x1f0] sm:$0xff]
    %v268 = vld [vmem:[#allocation2 + $0x1f8] sm:$0xff]
    %v269 = vld [vmem:[#allocation2 + $0x200] sm:$0xff]
    %v270 = vld [vmem:[#allocation2 + $0x208] sm:$0xff]
    %v271 = vld [vmem:[#allocation2 + $0x210] sm:$0xff]
    %v272 = vld [vmem:[#allocation2 + $0x218] sm:$0xff]
    %v273 = vld [vmem:[#allocation2 + $0x220] sm:$0xff]
    %v274 = vld [vmem:[#allocation2 + $0x228] sm:$0xff]
    %v275 = vld [vmem:[#allocation2 + $0x230] sm:$0xff]
    %v276 = vld [vmem:[#allocation2 + $0x238] sm:$0xff]
    %v277 = vld [vmem:[#allocation2 + $0x240] sm:$0xff]
    %v278 = vld [vmem:[#allocation2 + $0x248] sm:$0xff]
    %v279 = vld [vmem:[#allocation2 + $0x250] sm:$0xff]
    %v280 = vld [vmem:[#allocation2 + $0x258] sm:$0xff]
    %v281 = vld [vmem:[#allocation2 + $0x260] sm:$0xff]
    %v282 = vld [vmem:[#allocation2 + $0x268] sm:$0xff]
    %v283 = vld [vmem:[#allocation2 + $0x270] sm:$0xff]
    %v284 = vld [vmem:[#allocation2 + $0x278] sm:$0xff]
    %v285 = vld [vmem:[#allocation2 + $0x280] sm:$0xff]
    %v286 = vld [vmem:[#allocation2 + $0x288] sm:$0xff]
    %v287 = vld [vmem:[#allocation2 + $0x290] sm:$0xff]
    %v288 = vld [vmem:[#allocation2 + $0x298] sm:$0xff]
    %v289 = vld [vmem:[#allocation2 + $0x2a0] sm:$0xff]
    %v290 = vld [vmem:[#allocation2 + $0x2a8] sm:$0xff]
    %v291 = vld [vmem:[#allocation2 + $0x2b0] sm:$0xff]
    %v292 = vld [vmem:[#allocation2 + $0x2b8] sm:$0xff]
    %v293 = vld [vmem:[#allocation2 + $0x2c0] sm:$0xff]
    %v294 = vld [vmem:[#allocation2 + $0x2c8] sm:$0xff]
    %v295 = vld [vmem:[#allocation2 + $0x2d0] sm:$0xff]
    %v296 = vld [vmem:[#allocation2 + $0x2d8] sm:$0xff]
    %v297 = vld [vmem:[#allocation2 + $0x2e0] sm:$0xff]
    %v298 = vld [vmem:[#allocation2 + $0x2e8] sm:$0xff]
    %v299 = vld [vmem:[#allocation2 + $0x2f0] sm:$0xff]
    %v300 = vld [vmem:[#allocation2 + $0x2f8] sm:$0xff]
    %v301 = vld [vmem:[#allocation2 + $0x300] sm:$0xff]
    %v302 = vld [vmem:[#allocation2 + $0x308] sm:$0xff]
    %v303 = vld [vmem:[#allocation2 + $0x310] sm:$0xff]
    %v304 = vld [vmem:[#allocation2 + $0x318] sm:$0xff]
    %v305 = vld [vmem:[#allocation2 + $0x320] sm:$0xff]
    %v306 = vld [vmem:[#allocation2 + $0x328] sm:$0xff]
    %v307 = vld [vmem:[#allocation2 + $0x330] sm:$0xff]
    %v308 = vld [vmem:[#allocation2 + $0x338] sm:$0xff]
    %v309 = vld [vmem:[#allocation2 + $0x340] sm:$0xff]
    %v310 = vld [vmem:[#allocation2 + $0x348] sm:$0xff]
    %v311 = vld [vmem:[#allocation2 + $0x350] sm:$0xff]
    %v312 = vld [vmem:[#allocation2 + $0x358] sm:$0xff]
    %v313 = vld [vmem:[#allocation2 + $0x360] sm:$0xff]
    %v314 = vld [vmem:[#allocation2 + $0x368] sm:$0xff]
    %v315 = vld [vmem:[#allocation2 + $0x370] sm:$0xff]
    %v316 = vld [vmem:[#allocation2 + $0x378] sm:$0xff]
    %v317 = vld [vmem:[#allocation2 + $0x380] sm:$0xff]
    %v318 = vld [vmem:[#allocation2 + $0x388] sm:$0xff]
    %v319 = vld [vmem:[#allocation2 + $0x390] sm:$0xff]
    %v320 = vld [vmem:[#allocation2 + $0x398] sm:$0xff]
    %v321 = vld [vmem:[#allocation2 + $0x3a0] sm:$0xff]
    %v322 = vld [vmem:[#allocation2 + $0x3a8] sm:$0xff]
    %v323 = vld [vmem:[#allocation2 + $0x3b0] sm:$0xff]
    %v324 = vld [vmem:[#allocation2 + $0x3b8] sm:$0xff]
    %v325 = vld [vmem:[#allocation2 + $0x3c0] sm:$0xff]
    %v326 = vld [vmem:[#allocation2 + $0x3c8] sm:$0xff]
    %v327 = vld [vmem:[#allocation2 + $0x3d0] sm:$0xff]
    %v328 = vld [vmem:[#allocation2 + $0x3d8] sm:$0xff]
    %v329 = vld [vmem:[#allocation2 + $0x3e0] sm:$0xff]
    %v330 = vld [vmem:[#allocation2 + $0x3e8] sm:$0xff]
    %v331 = vld [vmem:[#allocation2 + $0x3f0] sm:$0xff]
    %v332 = vld [vmem:[#allocation2 + $0x3f8] sm:$0xff]
    %v333 = vld [vmem:[%s4] sm:$0xf]
    %v335 = vlaneseq
    %v336 = vshrl.u32 %v335, 7
    %v337 = vsub.s32 0, %v336
    %v338 = vrot.slane %v333, %v337
    %v339 = vlaneseq
    %v340 = vshrl.u32 %v339, 7
    %v341 = vsub.s32 1, %v340
    %v342 = vrot.slane %v333, %v341
    %v343 = vlaneseq
    %v344 = vshrl.u32 %v343, 7
    %v345 = vsub.s32 2, %v344
    %v346 = vrot.slane %v333, %v345
    %v347 = vlaneseq
    %v348 = vshrl.u32 %v347, 7
    %v349 = vsub.s32 3, %v348
    %v350 = vrot.slane %v333, %v349
    %v483 = vunpack.c.l.b16 %v205
    %v484 = vunpack.c.h.b16 %v205
    %v485 = vunpack.c.l.b16 %v206
    %v486 = vunpack.c.h.b16 %v206
    %v487 = vunpack.c.l.b16 %v207
    %v488 = vunpack.c.h.b16 %v207
    %v489 = vunpack.c.l.b16 %v208
    %v490 = vunpack.c.h.b16 %v208
    %v491 = vunpack.c.l.b16 %v209
    %v492 = vunpack.c.h.b16 %v209
    %v493 = vunpack.c.l.b16 %v210
    %v494 = vunpack.c.h.b16 %v210
    %v495 = vunpack.c.l.b16 %v211
    %v496 = vunpack.c.h.b16 %v211
    %v497 = vunpack.c.l.b16 %v212
    %v498 = vunpack.c.h.b16 %v212
    %v499 = vunpack.c.l.b16 %v213
    %v500 = vunpack.c.h.b16 %v213
    %v501 = vunpack.c.l.b16 %v214
    %v502 = vunpack.c.h.b16 %v214
    %v503 = vunpack.c.l.b16 %v215
    %v504 = vunpack.c.h.b16 %v215
    %v505 = vunpack.c.l.b16 %v216
    %v506 = vunpack.c.h.b16 %v216
    %v507 = vunpack.c.l.b16 %v217
    %v508 = vunpack.c.h.b16 %v217
    %v509 = vunpack.c.l.b16 %v218
    %v510 = vunpack.c.h.b16 %v218
    %v511 = vunpack.c.l.b16 %v219
    %v512 = vunpack.c.h.b16 %v219
    %v513 = vunpack.c.l.b16 %v220
    %v514 = vunpack.c.h.b16 %v220
    %v515 = vunpack.c.l.b16 %v221
    %v516 = vunpack.c.h.b16 %v221
    %v517 = vunpack.c.l.b16 %v222
    %v518 = vunpack.c.h.b16 %v222
    %v519 = vunpack.c.l.b16 %v223
    %v520 = vunpack.c.h.b16 %v223
    %v521 = vunpack.c.l.b16 %v224
    %v522 = vunpack.c.h.b16 %v224
    %v523 = vunpack.c.l.b16 %v225
    %v524 = vunpack.c.h.b16 %v225
    %v525 = vunpack.c.l.b16 %v226
    %v526 = vunpack.c.h.b16 %v226
    %v527 = vunpack.c.l.b16 %v227
    %v528 = vunpack.c.h.b16 %v227
    %v529 = vunpack.c.l.b16 %v228
    %v530 = vunpack.c.h.b16 %v228
    %v531 = vunpack.c.l.b16 %v229
    %v532 = vunpack.c.h.b16 %v229
    %v533 = vunpack.c.l.b16 %v230
    %v534 = vunpack.c.h.b16 %v230
    %v535 = vunpack.c.l.b16 %v231
    %v536 = vunpack.c.h.b16 %v231
    %v537 = vunpack.c.l.b16 %v232
    %v538 = vunpack.c.h.b16 %v232
    %v539 = vunpack.c.l.b16 %v233
    %v540 = vunpack.c.h.b16 %v233
    %v541 = vunpack.c.l.b16 %v234
    %v542 = vunpack.c.h.b16 %v234
    %v543 = vunpack.c.l.b16 %v235
    %v544 = vunpack.c.h.b16 %v235
    %v545 = vunpack.c.l.b16 %v236
    %v546 = vunpack.c.h.b16 %v236
    %v547 = vunpack.c.l.b16 %v237
    %v548 = vunpack.c.h.b16 %v237
    %v549 = vunpack.c.l.b16 %v238
    %v550 = vunpack.c.h.b16 %v238
    %v551 = vunpack.c.l.b16 %v239
    %v552 = vunpack.c.h.b16 %v239
    %v553 = vunpack.c.l.b16 %v240
    %v554 = vunpack.c.h.b16 %v240
    %v555 = vunpack.c.l.b16 %v241
    %v556 = vunpack.c.h.b16 %v241
    %v557 = vunpack.c.l.b16 %v242
    %v558 = vunpack.c.h.b16 %v242
    %v559 = vunpack.c.l.b16 %v243
    %v560 = vunpack.c.h.b16 %v243
    %v561 = vunpack.c.l.b16 %v244
    %v562 = vunpack.c.h.b16 %v244
    %v563 = vunpack.c.l.b16 %v245
    %v564 = vunpack.c.h.b16 %v245
    %v565 = vunpack.c.l.b16 %v246
    %v566 = vunpack.c.h.b16 %v246
    %v567 = vunpack.c.l.b16 %v247
    %v568 = vunpack.c.h.b16 %v247
    %v569 = vunpack.c.l.b16 %v248
    %v570 = vunpack.c.h.b16 %v248
    %v571 = vunpack.c.l.b16 %v249
    %v572 = vunpack.c.h.b16 %v249
    %v573 = vunpack.c.l.b16 %v250
    %v574 = vunpack.c.h.b16 %v250
    %v575 = vunpack.c.l.b16 %v251
    %v576 = vunpack.c.h.b16 %v251
    %v577 = vunpack.c.l.b16 %v252
    %v578 = vunpack.c.h.b16 %v252
    %v579 = vunpack.c.l.b16 %v253
    %v580 = vunpack.c.h.b16 %v253
    %v581 = vunpack.c.l.b16 %v254
    %v582 = vunpack.c.h.b16 %v254
    %v583 = vunpack.c.l.b16 %v255
    %v584 = vunpack.c.h.b16 %v255
    %v585 = vunpack.c.l.b16 %v256
    %v586 = vunpack.c.h.b16 %v256
    %v587 = vunpack.c.l.b16 %v257
    %v588 = vunpack.c.h.b16 %v257
    %v589 = vunpack.c.l.b16 %v258
    %v590 = vunpack.c.h.b16 %v258
    %v591 = vunpack.c.l.b16 %v259
    %v592 = vunpack.c.h.b16 %v259
    %v593 = vunpack.c.l.b16 %v260
    %v594 = vunpack.c.h.b16 %v260
    %v595 = vunpack.c.l.b16 %v261
    %v596 = vunpack.c.h.b16 %v261
    %v597 = vunpack.c.l.b16 %v262
    %v598 = vunpack.c.h.b16 %v262
    %v599 = vunpack.c.l.b16 %v263
    %v600 = vunpack.c.h.b16 %v263
    %v601 = vunpack.c.l.b16 %v264
    %v602 = vunpack.c.h.b16 %v264
    %v603 = vunpack.c.l.b16 %v265
    %v604 = vunpack.c.h.b16 %v265
    %v605 = vunpack.c.l.b16 %v266
    %v606 = vunpack.c.h.b16 %v266
    %v607 = vunpack.c.l.b16 %v267
    %v608 = vunpack.c.h.b16 %v267
    %v609 = vunpack.c.l.b16 %v268
    %v610 = vunpack.c.h.b16 %v268
    %v611 = vunpack.c.l.b16 %v269
    %v612 = vunpack.c.h.b16 %v269
    %v613 = vunpack.c.l.b16 %v270
    %v614 = vunpack.c.h.b16 %v270
    %v615 = vunpack.c.l.b16 %v271
    %v616 = vunpack.c.h.b16 %v271
    %v617 = vunpack.c.l.b16 %v272
    %v618 = vunpack.c.h.b16 %v272
    %v619 = vunpack.c.l.b16 %v273
    %v620 = vunpack.c.h.b16 %v273
    %v621 = vunpack.c.l.b16 %v274
    %v622 = vunpack.c.h.b16 %v274
    %v623 = vunpack.c.l.b16 %v275
    %v624 = vunpack.c.h.b16 %v275
    %v625 = vunpack.c.l.b16 %v276
    %v626 = vunpack.c.h.b16 %v276
    %v627 = vunpack.c.l.b16 %v277
    %v628 = vunpack.c.h.b16 %v277
    %v629 = vunpack.c.l.b16 %v278
    %v630 = vunpack.c.h.b16 %v278
    %v631 = vunpack.c.l.b16 %v279
    %v632 = vunpack.c.h.b16 %v279
    %v633 = vunpack.c.l.b16 %v280
    %v634 = vunpack.c.h.b16 %v280
    %v635 = vunpack.c.l.b16 %v281
    %v636 = vunpack.c.h.b16 %v281
    %v637 = vunpack.c.l.b16 %v282
    %v638 = vunpack.c.h.b16 %v282
    %v639 = vunpack.c.l.b16 %v283
    %v640 = vunpack.c.h.b16 %v283
    %v641 = vunpack.c.l.b16 %v284
    %v642 = vunpack.c.h.b16 %v284
    %v643 = vunpack.c.l.b16 %v285
    %v644 = vunpack.c.h.b16 %v285
    %v645 = vunpack.c.l.b16 %v286
    %v646 = vunpack.c.h.b16 %v286
    %v647 = vunpack.c.l.b16 %v287
    %v648 = vunpack.c.h.b16 %v287
    %v649 = vunpack.c.l.b16 %v288
    %v650 = vunpack.c.h.b16 %v288
    %v651 = vunpack.c.l.b16 %v289
    %v652 = vunpack.c.h.b16 %v289
    %v653 = vunpack.c.l.b16 %v290
    %v654 = vunpack.c.h.b16 %v290
    %v655 = vunpack.c.l.b16 %v291
    %v656 = vunpack.c.h.b16 %v291
    %v657 = vunpack.c.l.b16 %v292
    %v658 = vunpack.c.h.b16 %v292
    %v659 = vunpack.c.l.b16 %v293
    %v660 = vunpack.c.h.b16 %v293
    %v661 = vunpack.c.l.b16 %v294
    %v662 = vunpack.c.h.b16 %v294
    %v663 = vunpack.c.l.b16 %v295
    %v664 = vunpack.c.h.b16 %v295
    %v665 = vunpack.c.l.b16 %v296
    %v666 = vunpack.c.h.b16 %v296
    %v667 = vunpack.c.l.b16 %v297
    %v668 = vunpack.c.h.b16 %v297
    %v669 = vunpack.c.l.b16 %v298
    %v670 = vunpack.c.h.b16 %v298
    %v671 = vunpack.c.l.b16 %v299
    %v672 = vunpack.c.h.b16 %v299
    %v673 = vunpack.c.l.b16 %v300
    %v674 = vunpack.c.h.b16 %v300
    %v675 = vunpack.c.l.b16 %v301
    %v676 = vunpack.c.h.b16 %v301
    %v677 = vunpack.c.l.b16 %v302
    %v678 = vunpack.c.h.b16 %v302
    %v679 = vunpack.c.l.b16 %v303
    %v680 = vunpack.c.h.b16 %v303
    %v681 = vunpack.c.l.b16 %v304
    %v682 = vunpack.c.h.b16 %v304
    %v683 = vunpack.c.l.b16 %v305
    %v684 = vunpack.c.h.b16 %v305
    %v685 = vunpack.c.l.b16 %v306
    %v686 = vunpack.c.h.b16 %v306
    %v687 = vunpack.c.l.b16 %v307
    %v688 = vunpack.c.h.b16 %v307
    %v689 = vunpack.c.l.b16 %v308
    %v690 = vunpack.c.h.b16 %v308
    %v691 = vunpack.c.l.b16 %v309
    %v692 = vunpack.c.h.b16 %v309
    %v693 = vunpack.c.l.b16 %v310
    %v694 = vunpack.c.h.b16 %v310
    %v695 = vunpack.c.l.b16 %v311
    %v696 = vunpack.c.h.b16 %v311
    %v697 = vunpack.c.l.b16 %v312
    %v698 = vunpack.c.h.b16 %v312
    %v699 = vunpack.c.l.b16 %v313
    %v700 = vunpack.c.h.b16 %v313
    %v701 = vunpack.c.l.b16 %v314
    %v702 = vunpack.c.h.b16 %v314
    %v703 = vunpack.c.l.b16 %v315
    %v704 = vunpack.c.h.b16 %v315
    %v705 = vunpack.c.l.b16 %v316
    %v706 = vunpack.c.h.b16 %v316
    %v707 = vunpack.c.l.b16 %v317
    %v708 = vunpack.c.h.b16 %v317
    %v709 = vunpack.c.l.b16 %v318
    %v710 = vunpack.c.h.b16 %v318
    %v711 = vunpack.c.l.b16 %v319
    %v712 = vunpack.c.h.b16 %v319
    %v713 = vunpack.c.l.b16 %v320
    %v714 = vunpack.c.h.b16 %v320
    %v715 = vunpack.c.l.b16 %v321
    %v716 = vunpack.c.h.b16 %v321
    %v717 = vunpack.c.l.b16 %v322
    %v718 = vunpack.c.h.b16 %v322
    %v719 = vunpack.c.l.b16 %v323
    %v720 = vunpack.c.h.b16 %v323
    %v721 = vunpack.c.l.b16 %v324
    %v722 = vunpack.c.h.b16 %v324
    %v723 = vunpack.c.l.b16 %v325
    %v724 = vunpack.c.h.b16 %v325
    %v725 = vunpack.c.l.b16 %v326
    %v726 = vunpack.c.h.b16 %v326
    %v727 = vunpack.c.l.b16 %v327
    %v728 = vunpack.c.h.b16 %v327
    %v729 = vunpack.c.l.b16 %v328
    %v730 = vunpack.c.h.b16 %v328
    %v731 = vunpack.c.l.b16 %v329
    %v732 = vunpack.c.h.b16 %v329
    %v733 = vunpack.c.l.b16 %v330
    %v734 = vunpack.c.h.b16 %v330
    %v735 = vunpack.c.l.b16 %v331
    %v736 = vunpack.c.h.b16 %v331
    %v737 = vunpack.c.l.b16 %v332
    %v738 = vunpack.c.h.b16 %v332
    %v739 = vpack.c.b16 %v487, %v483
    %v740 = vpack.c.b16 %v488, %v484
    %v741 = vpack.c.b16 %v489, %v485
    %v742 = vpack.c.b16 %v490, %v486
    %v743 = vpack.c.b16 %v495, %v491
    %v744 = vpack.c.b16 %v496, %v492
    %v745 = vpack.c.b16 %v497, %v493
    %v746 = vpack.c.b16 %v498, %v494
    %v747 = vpack.c.b16 %v503, %v499
    %v748 = vpack.c.b16 %v504, %v500
    %v749 = vpack.c.b16 %v505, %v501
    %v750 = vpack.c.b16 %v506, %v502
    %v751 = vpack.c.b16 %v511, %v507
    %v752 = vpack.c.b16 %v512, %v508
    %v753 = vpack.c.b16 %v513, %v509
    %v754 = vpack.c.b16 %v514, %v510
    %v755 = vpack.c.b16 %v519, %v515
    %v756 = vpack.c.b16 %v520, %v516
    %v757 = vpack.c.b16 %v521, %v517
    %v758 = vpack.c.b16 %v522, %v518
    %v759 = vpack.c.b16 %v527, %v523
    %v760 = vpack.c.b16 %v528, %v524
    %v761 = vpack.c.b16 %v529, %v525
    %v762 = vpack.c.b16 %v530, %v526
    %v763 = vpack.c.b16 %v535, %v531
    %v764 = vpack.c.b16 %v536, %v532
    %v765 = vpack.c.b16 %v537, %v533
    %v766 = vpack.c.b16 %v538, %v534
    %v767 = vpack.c.b16 %v543, %v539
    %v768 = vpack.c.b16 %v544, %v540
    %v769 = vpack.c.b16 %v545, %v541
    %v770 = vpack.c.b16 %v546, %v542
    %v771 = vpack.c.b16 %v551, %v547
    %v772 = vpack.c.b16 %v552, %v548
    %v773 = vpack.c.b16 %v553, %v549
    %v774 = vpack.c.b16 %v554, %v550
    %v775 = vpack.c.b16 %v559, %v555
    %v776 = vpack.c.b16 %v560, %v556
    %v777 = vpack.c.b16 %v561, %v557
    %v778 = vpack.c.b16 %v562, %v558
    %v779 = vpack.c.b16 %v567, %v563
    %v780 = vpack.c.b16 %v568, %v564
    %v781 = vpack.c.b16 %v569, %v565
    %v782 = vpack.c.b16 %v570, %v566
    %v783 = vpack.c.b16 %v575, %v571
    %v784 = vpack.c.b16 %v576, %v572
    %v785 = vpack.c.b16 %v577, %v573
    %v786 = vpack.c.b16 %v578, %v574
    %v787 = vpack.c.b16 %v583, %v579
    %v788 = vpack.c.b16 %v584, %v580
    %v789 = vpack.c.b16 %v585, %v581
    %v790 = vpack.c.b16 %v586, %v582
    %v791 = vpack.c.b16 %v591, %v587
    %v792 = vpack.c.b16 %v592, %v588
    %v793 = vpack.c.b16 %v593, %v589
    %v794 = vpack.c.b16 %v594, %v590
    %v795 = vpack.c.b16 %v599, %v595
    %v796 = vpack.c.b16 %v600, %v596
    %v797 = vpack.c.b16 %v601, %v597
    %v798 = vpack.c.b16 %v602, %v598
    %v799 = vpack.c.b16 %v607, %v603
    %v800 = vpack.c.b16 %v608, %v604
    %v801 = vpack.c.b16 %v609, %v605
    %v802 = vpack.c.b16 %v610, %v606
    %v803 = vpack.c.b16 %v615, %v611
    %v804 = vpack.c.b16 %v616, %v612
    %v805 = vpack.c.b16 %v617, %v613
    %v806 = vpack.c.b16 %v618, %v614
    %v807 = vpack.c.b16 %v623, %v619
    %v808 = vpack.c.b16 %v624, %v620
    %v809 = vpack.c.b16 %v625, %v621
    %v810 = vpack.c.b16 %v626, %v622
    %v811 = vpack.c.b16 %v631, %v627
    %v812 = vpack.c.b16 %v632, %v628
    %v813 = vpack.c.b16 %v633, %v629
    %v814 = vpack.c.b16 %v634, %v630
    %v815 = vpack.c.b16 %v639, %v635
    %v816 = vpack.c.b16 %v640, %v636
    %v817 = vpack.c.b16 %v641, %v637
    %v818 = vpack.c.b16 %v642, %v638
    %v819 = vpack.c.b16 %v647, %v643
    %v820 = vpack.c.b16 %v648, %v644
    %v821 = vpack.c.b16 %v649, %v645
    %v822 = vpack.c.b16 %v650, %v646
    %v823 = vpack.c.b16 %v655, %v651
    %v824 = vpack.c.b16 %v656, %v652
    %v825 = vpack.c.b16 %v657, %v653
    %v826 = vpack.c.b16 %v658, %v654
    %v827 = vpack.c.b16 %v663, %v659
    %v828 = vpack.c.b16 %v664, %v660
    %v829 = vpack.c.b16 %v665, %v661
    %v830 = vpack.c.b16 %v666, %v662
    %v831 = vpack.c.b16 %v671, %v667
    %v832 = vpack.c.b16 %v672, %v668
    %v833 = vpack.c.b16 %v673, %v669
    %v834 = vpack.c.b16 %v674, %v670
    %v835 = vpack.c.b16 %v679, %v675
    %v836 = vpack.c.b16 %v680, %v676
    %v837 = vpack.c.b16 %v681, %v677
    %v838 = vpack.c.b16 %v682, %v678
    %v839 = vpack.c.b16 %v687, %v683
    %v840 = vpack.c.b16 %v688, %v684
    %v841 = vpack.c.b16 %v689, %v685
    %v842 = vpack.c.b16 %v690, %v686
    %v843 = vpack.c.b16 %v695, %v691
    %v844 = vpack.c.b16 %v696, %v692
    %v845 = vpack.c.b16 %v697, %v693
    %v846 = vpack.c.b16 %v698, %v694
    %v847 = vpack.c.b16 %v703, %v699
    %v848 = vpack.c.b16 %v704, %v700
    %v849 = vpack.c.b16 %v705, %v701
    %v850 = vpack.c.b16 %v706, %v702
    %v851 = vpack.c.b16 %v711, %v707
    %v852 = vpack.c.b16 %v712, %v708
    %v853 = vpack.c.b16 %v713, %v709
    %v854 = vpack.c.b16 %v714, %v710
    %v855 = vpack.c.b16 %v719, %v715
    %v856 = vpack.c.b16 %v720, %v716
    %v857 = vpack.c.b16 %v721, %v717
    %v858 = vpack.c.b16 %v722, %v718
    %v859 = vpack.c.b16 %v727, %v723
    %v860 = vpack.c.b16 %v728, %v724
    %v861 = vpack.c.b16 %v729, %v725
    %v862 = vpack.c.b16 %v730, %v726
    %v863 = vpack.c.b16 %v735, %v731
    %v864 = vpack.c.b16 %v736, %v732
    %v865 = vpack.c.b16 %v737, %v733
    %v866 = vpack.c.b16 %v738, %v734
    %995 = vmatprep.subr.bf16.mxu0 %v740
    %996 = vmatpush1.bf16.msra.mxu0 %v739
    %997 = vmatprep.subr.bf16.mxu0 %v744
    %998 = vmatpush1.bf16.msra.mxu0 %v743
    %999 = vmatprep.subr.bf16.mxu0 %v748
    %1000 = vmatpush1.bf16.msra.mxu0 %v747
    %1001 = vmatprep.subr.bf16.mxu0 %v752
    %1002 = vmatpush1.bf16.msra.mxu0 %v751
    %1003 = vmatprep.subr.bf16.mxu0 %v756
    %1004 = vmatpush1.bf16.msra.mxu0 %v755
    %1005 = vmatprep.subr.bf16.mxu0 %v760
    %1006 = vmatpush1.bf16.msra.mxu0 %v759
    %1007 = vmatprep.subr.bf16.mxu0 %v764
    %1008 = vmatpush1.bf16.msra.mxu0 %v763
    %1009 = vmatprep.subr.bf16.mxu0 %v768
    %1010 = vmatpush1.bf16.msra.mxu0 %v767
    %1011 = vmatprep.subr.bf16.mxu0 %v772
    %1012 = vmatpush1.bf16.msra.mxu0 %v771
    %1013 = vmatprep.subr.bf16.mxu0 %v776
    %1014 = vmatpush1.bf16.msra.mxu0 %v775
    %1015 = vmatprep.subr.bf16.mxu0 %v780
    %1016 = vmatpush1.bf16.msra.mxu0 %v779
    %1017 = vmatprep.subr.bf16.mxu0 %v784
    %1018 = vmatpush1.bf16.msra.mxu0 %v783
    %1019 = vmatprep.subr.bf16.mxu0 %v788
    %1020 = vmatpush1.bf16.msra.mxu0 %v787
    %1021 = vmatprep.subr.bf16.mxu0 %v792
    %1022 = vmatpush1.bf16.msra.mxu0 %v791
    %1023 = vmatprep.subr.bf16.mxu0 %v796
    %1024 = vmatpush1.bf16.msra.mxu0 %v795
    %1025 = vmatprep.subr.bf16.mxu0 %v800
    %1026 = vmatpush1.bf16.msra.mxu0 %v799
    %1027 = vmatprep.mubr.bf16.mxu0 %v202
    %1028 = vmatmul.mubr.bf16.gmra.mrb[0].mxu0 %v201
    %v1029 = vpop.f32.mrb[0].mxu0
    %v1030 = vadd.f32 %v338, %v1029
    %v1031 = vpop.f32.mrb[0].mxu0
    %v1032 = vadd.f32 %v342, %v1031
    %v1033 = vpop.f32.mrb[0].mxu0
    %v1034 = vpop.f32.mrb[0].mxu0
    %1035 = vdwg.mxu0
    %1036 = vmatprep.subr.bf16.mxu0 %v804
    %1037 = vmatpush1.bf16.msra.mxu0 %v803
    %1038 = vmatprep.subr.bf16.mxu0 %v808
    %1039 = vmatpush1.bf16.msra.mxu0 %v807
    %1040 = vmatprep.subr.bf16.mxu0 %v812
    %1041 = vmatpush1.bf16.msra.mxu0 %v811
    %1042 = vmatprep.subr.bf16.mxu0 %v816
    %1043 = vmatpush1.bf16.msra.mxu0 %v815
    %1044 = vmatprep.subr.bf16.mxu0 %v820
    %1045 = vmatpush1.bf16.msra.mxu0 %v819
    %1046 = vmatprep.subr.bf16.mxu0 %v824
    %1047 = vmatpush1.bf16.msra.mxu0 %v823
    %1048 = vmatprep.subr.bf16.mxu0 %v828
    %1049 = vmatpush1.bf16.msra.mxu0 %v827
    %1050 = vmatprep.subr.bf16.mxu0 %v832
    %1051 = vmatpush1.bf16.msra.mxu0 %v831
    %1052 = vmatprep.subr.bf16.mxu0 %v836
    %1053 = vmatpush1.bf16.msra.mxu0 %v835
    %1054 = vmatprep.subr.bf16.mxu0 %v840
    %1055 = vmatpush1.bf16.msra.mxu0 %v839
    %1056 = vmatprep.subr.bf16.mxu0 %v844
    %1057 = vmatpush1.bf16.msra.mxu0 %v843
    %1058 = vmatprep.subr.bf16.mxu0 %v848
    %1059 = vmatpush1.bf16.msra.mxu0 %v847
    %1060 = vmatprep.subr.bf16.mxu0 %v852
    %1061 = vmatpush1.bf16.msra.mxu0 %v851
    %1062 = vmatprep.subr.bf16.mxu0 %v856
    %1063 = vmatpush1.bf16.msra.mxu0 %v855
    %1064 = vmatprep.subr.bf16.mxu0 %v860
    %1065 = vmatpush1.bf16.msra.mxu0 %v859
    %1066 = vmatprep.subr.bf16.mxu0 %v864
    %1067 = vmatpush1.bf16.msra.mxu0 %v863
    %1068 = vmatprep.mubr.bf16.mxu0 %v204
    %1069 = vmatmul.mubr.bf16.gmra.mrb[0].mxu0 %v203
    %v1070 = vpop.f32.mrb[0].mxu0
    %v1071 = vadd.f32 %v1030, %v1070
    %v1072 = vpop.f32.mrb[0].mxu0
    %v1073 = vadd.f32 %v1032, %v1072
    %v1074 = vpop.f32.mrb[0].mxu0
    %v1075 = vpop.f32.mrb[0].mxu0
    %1076 = vdwg.mxu0
    %1077 = vmatprep.subr.bf16.mxu0 %v742
    %1078 = vmatpush1.bf16.msra.mxu0 %v741
    %1079 = vmatprep.subr.bf16.mxu0 %v746
    %1080 = vmatpush1.bf16.msra.mxu0 %v745
    %1081 = vmatprep.subr.bf16.mxu0 %v750
    %1082 = vmatpush1.bf16.msra.mxu0 %v749
    %1083 = vmatprep.subr.bf16.mxu0 %v754
    %1084 = vmatpush1.bf16.msra.mxu0 %v753
    %1085 = vmatprep.subr.bf16.mxu0 %v758
    %1086 = vmatpush1.bf16.msra.mxu0 %v757
    %1087 = vmatprep.subr.bf16.mxu0 %v762
    %1088 = vmatpush1.bf16.msra.mxu0 %v761
    %1089 = vmatprep.subr.bf16.mxu0 %v766
    %1090 = vmatpush1.bf16.msra.mxu0 %v765
    %1091 = vmatprep.subr.bf16.mxu0 %v770
    %1092 = vmatpush1.bf16.msra.mxu0 %v769
    %1093 = vmatprep.subr.bf16.mxu0 %v774
    %1094 = vmatpush1.bf16.msra.mxu0 %v773
    %1095 = vmatprep.subr.bf16.mxu0 %v778
    %1096 = vmatpush1.bf16.msra.mxu0 %v777
    %1097 = vmatprep.subr.bf16.mxu0 %v782
    %1098 = vmatpush1.bf16.msra.mxu0 %v781
    %1099 = vmatprep.subr.bf16.mxu0 %v786
    %1100 = vmatpush1.bf16.msra.mxu0 %v785
    %1101 = vmatprep.subr.bf16.mxu0 %v790
    %1102 = vmatpush1.bf16.msra.mxu0 %v789
    %1103 = vmatprep.subr.bf16.mxu0 %v794
    %1104 = vmatpush1.bf16.msra.mxu0 %v793
    %1105 = vmatprep.subr.bf16.mxu0 %v798
    %1106 = vmatpush1.bf16.msra.mxu0 %v797
    %1107 = vmatprep.subr.bf16.mxu0 %v802
    %1108 = vmatpush1.bf16.msra.mxu0 %v801
    %1109 = vmatprep.mubr.bf16.mxu0 %v202
    %1110 = vmatmul.mubr.bf16.gmra.mrb[0].mxu0 %v201
    %v1111 = vpop.f32.mrb[0].mxu0
    %v1112 = vadd.f32 %v346, %v1111
    %v1113 = vpop.f32.mrb[0].mxu0
    %v1114 = vadd.f32 %v350, %v1113
    %v1115 = vpop.f32.mrb[0].mxu0
    %v1116 = vpop.f32.mrb[0].mxu0
    %1117 = vdwg.mxu0
    %1118 = vmatprep.subr.bf16.mxu0 %v806
    %1119 = vmatpush1.bf16.msra.mxu0 %v805
    %1120 = vmatprep.subr.bf16.mxu0 %v810
    %1121 = vmatpush1.bf16.msra.mxu0 %v809
    %1122 = vmatprep.subr.bf16.mxu0 %v814
    %1123 = vmatpush1.bf16.msra.mxu0 %v813
    %1124 = vmatprep.subr.bf16.mxu0 %v818
    %1125 = vmatpush1.bf16.msra.mxu0 %v817
    %1126 = vmatprep.subr.bf16.mxu0 %v822
    %1127 = vmatpush1.bf16.msra.mxu0 %v821
    %1128 = vmatprep.subr.bf16.mxu0 %v826
    %1129 = vmatpush1.bf16.msra.mxu0 %v825
    %1130 = vmatprep.subr.bf16.mxu0 %v830
    %1131 = vmatpush1.bf16.msra.mxu0 %v829
    %1132 = vmatprep.subr.bf16.mxu0 %v834
    %1133 = vmatpush1.bf16.msra.mxu0 %v833
    %1134 = vmatprep.subr.bf16.mxu0 %v838
    %1135 = vmatpush1.bf16.msra.mxu0 %v837
    %1136 = vmatprep.subr.bf16.mxu0 %v842
    %1137 = vmatpush1.bf16.msra.mxu0 %v841
    %1138 = vmatprep.subr.bf16.mxu0 %v846
    %1139 = vmatpush1.bf16.msra.mxu0 %v845
    %1140 = vmatprep.subr.bf16.mxu0 %v850
    %1141 = vmatpush1.bf16.msra.mxu0 %v849
    %1142 = vmatprep.subr.bf16.mxu0 %v854
    %1143 = vmatpush1.bf16.msra.mxu0 %v853
    %1144 = vmatprep.subr.bf16.mxu0 %v858
    %1145 = vmatpush1.bf16.msra.mxu0 %v857
    %1146 = vmatprep.subr.bf16.mxu0 %v862
    %1147 = vmatpush1.bf16.msra.mxu0 %v861
    %1148 = vmatprep.subr.bf16.mxu0 %v866
    %1149 = vmatpush1.bf16.msra.mxu0 %v865
    %1150 = vmatprep.mubr.bf16.mxu0 %v204
    %1151 = vmatmul.mubr.bf16.gmra.mrb[0].mxu0 %v203
    %v1152 = vpop.f32.mrb[0].mxu0
    %v1153 = vadd.f32 %v1112, %v1152
    %v1154 = vpop.f32.mrb[0].mxu0
    %v1155 = vadd.f32 %v1114, %v1154
    %v1156 = vpop.f32.mrb[0].mxu0
    %v1157 = vpop.f32.mrb[0].mxu0
    %1158 = vdwg.mxu0
    %v1159 = vmax.f32 %v1071, 0.0
    %v1160 = vmax.f32 %v1073, 0.0
    %v1161 = vmax.f32 %v1153, 0.0
    %v1162 = vmax.f32 %v1155, 0.0
    %v1163 = vpack.c.bf16 %v1159, %v1159
    %v1164 = vpack.c.bf16 %v1160, %v1160
    %v1165 = vpack.c.bf16 %v1161, %v1161
    %v1166 = vpack.c.bf16 %v1162, %v1162
    %v1167 = vld [vmem:[#allocation5] sm:$0xff]
    %v1168 = vld [vmem:[#allocation5 + $0x8] sm:$0xff]
    %v1169 = vld [vmem:[#allocation5 + $0x10] sm:$0xff]
    %v1170 = vld [vmem:[#allocation5 + $0x18] sm:$0xff]
    %v1171 = vld [vmem:[#allocation5 + $0x20] sm:$0xff]
    %v1172 = vld [vmem:[#allocation5 + $0x28] sm:$0xff]
    %v1173 = vld [vmem:[#allocation5 + $0x30] sm:$0xff]
    %v1174 = vld [vmem:[#allocation5 + $0x38] sm:$0xff]
    %v1175 = vld [vmem:[#allocation5 + $0x40] sm:$0xff]
    %v1176 = vld [vmem:[#allocation5 + $0x48] sm:$0xff]
    %v1177 = vld [vmem:[#allocation5 + $0x50] sm:$0xff]
    %v1178 = vld [vmem:[#allocation5 + $0x58] sm:$0xff]
    %v1179 = vld [vmem:[#allocation5 + $0x60] sm:$0xff]
    %v1180 = vld [vmem:[#allocation5 + $0x68] sm:$0xff]
    %v1181 = vld [vmem:[#allocation5 + $0x70] sm:$0xff]
    %v1182 = vld [vmem:[#allocation5 + $0x78] sm:$0xff]
    %v1183 = vld [vmem:[#allocation5 + $0x80] sm:$0xff]
    %v1184 = vld [vmem:[#allocation5 + $0x88] sm:$0xff]
    %v1185 = vld [vmem:[#allocation5 + $0x90] sm:$0xff]
    %v1186 = vld [vmem:[#allocation5 + $0x98] sm:$0xff]
    %v1187 = vld [vmem:[#allocation5 + $0xa0] sm:$0xff]
    %v1188 = vld [vmem:[#allocation5 + $0xa8] sm:$0xff]
    %v1189 = vld [vmem:[#allocation5 + $0xb0] sm:$0xff]
    %v1190 = vld [vmem:[#allocation5 + $0xb8] sm:$0xff]
    %v1191 = vld [vmem:[#allocation5 + $0xc0] sm:$0xff]
    %v1192 = vld [vmem:[#allocation5 + $0xc8] sm:$0xff]
    %v1193 = vld [vmem:[#allocation5 + $0xd0] sm:$0xff]
    %v1194 = vld [vmem:[#allocation5 + $0xd8] sm:$0xff]
    %v1195 = vld [vmem:[#allocation5 + $0xe0] sm:$0xff]
    %v1196 = vld [vmem:[#allocation5 + $0xe8] sm:$0xff]
    %v1197 = vld [vmem:[#allocation5 + $0xf0] sm:$0xff]
    %v1198 = vld [vmem:[#allocation5 + $0xf8] sm:$0xff]
    %v1199 = vld [vmem:[#allocation5 + $0x100] sm:$0xff]
    %v1200 = vld [vmem:[#allocation5 + $0x108] sm:$0xff]
    %v1201 = vld [vmem:[#allocation5 + $0x110] sm:$0xff]
    %v1202 = vld [vmem:[#allocation5 + $0x118] sm:$0xff]
    %v1203 = vld [vmem:[#allocation5 + $0x120] sm:$0xff]
    %v1204 = vld [vmem:[#allocation5 + $0x128] sm:$0xff]
    %v1205 = vld [vmem:[#allocation5 + $0x130] sm:$0xff]
    %v1206 = vld [vmem:[#allocation5 + $0x138] sm:$0xff]
    %v1207 = vld [vmem:[#allocation5 + $0x140] sm:$0xff]
    %v1208 = vld [vmem:[#allocation5 + $0x148] sm:$0xff]
    %v1209 = vld [vmem:[#allocation5 + $0x150] sm:$0xff]
    %v1210 = vld [vmem:[#allocation5 + $0x158] sm:$0xff]
    %v1211 = vld [vmem:[#allocation5 + $0x160] sm:$0xff]
    %v1212 = vld [vmem:[#allocation5 + $0x168] sm:$0xff]
    %v1213 = vld [vmem:[#allocation5 + $0x170] sm:$0xff]
    %v1214 = vld [vmem:[#allocation5 + $0x178] sm:$0xff]
    %v1215 = vld [vmem:[#allocation5 + $0x180] sm:$0xff]
    %v1216 = vld [vmem:[#allocation5 + $0x188] sm:$0xff]
    %v1217 = vld [vmem:[#allocation5 + $0x190] sm:$0xff]
    %v1218 = vld [vmem:[#allocation5 + $0x198] sm:$0xff]
    %v1219 = vld [vmem:[#allocation5 + $0x1a0] sm:$0xff]
    %v1220 = vld [vmem:[#allocation5 + $0x1a8] sm:$0xff]
    %v1221 = vld [vmem:[#allocation5 + $0x1b0] sm:$0xff]
    %v1222 = vld [vmem:[#allocation5 + $0x1b8] sm:$0xff]
    %v1223 = vld [vmem:[#allocation5 + $0x1c0] sm:$0xff]
    %v1224 = vld [vmem:[#allocation5 + $0x1c8] sm:$0xff]
    %v1225 = vld [vmem:[#allocation5 + $0x1d0] sm:$0xff]
    %v1226 = vld [vmem:[#allocation5 + $0x1d8] sm:$0xff]
    %v1227 = vld [vmem:[#allocation5 + $0x1e0] sm:$0xff]
    %v1228 = vld [vmem:[#allocation5 + $0x1e8] sm:$0xff]
    %v1229 = vld [vmem:[#allocation5 + $0x1f0] sm:$0xff]
    %v1230 = vld [vmem:[#allocation5 + $0x1f8] sm:$0xff]
    %v1231 = vld [vmem:[#allocation5 + $0x200] sm:$0xff]
    %v1232 = vld [vmem:[#allocation5 + $0x208] sm:$0xff]
    %v1233 = vld [vmem:[#allocation5 + $0x210] sm:$0xff]
    %v1234 = vld [vmem:[#allocation5 + $0x218] sm:$0xff]
    %v1235 = vld [vmem:[#allocation5 + $0x220] sm:$0xff]
    %v1236 = vld [vmem:[#allocation5 + $0x228] sm:$0xff]
    %v1237 = vld [vmem:[#allocation5 + $0x230] sm:$0xff]
    %v1238 = vld [vmem:[#allocation5 + $0x238] sm:$0xff]
    %v1239 = vld [vmem:[#allocation5 + $0x240] sm:$0xff]
    %v1240 = vld [vmem:[#allocation5 + $0x248] sm:$0xff]
    %v1241 = vld [vmem:[#allocation5 + $0x250] sm:$0xff]
    %v1242 = vld [vmem:[#allocation5 + $0x258] sm:$0xff]
    %v1243 = vld [vmem:[#allocation5 + $0x260] sm:$0xff]
    %v1244 = vld [vmem:[#allocation5 + $0x268] sm:$0xff]
    %v1245 = vld [vmem:[#allocation5 + $0x270] sm:$0xff]
    %v1246 = vld [vmem:[#allocation5 + $0x278] sm:$0xff]
    %v1247 = vld [vmem:[#allocation5 + $0x280] sm:$0xff]
    %v1248 = vld [vmem:[#allocation5 + $0x288] sm:$0xff]
    %v1249 = vld [vmem:[#allocation5 + $0x290] sm:$0xff]
    %v1250 = vld [vmem:[#allocation5 + $0x298] sm:$0xff]
    %v1251 = vld [vmem:[#allocation5 + $0x2a0] sm:$0xff]
    %v1252 = vld [vmem:[#allocation5 + $0x2a8] sm:$0xff]
    %v1253 = vld [vmem:[#allocation5 + $0x2b0] sm:$0xff]
    %v1254 = vld [vmem:[#allocation5 + $0x2b8] sm:$0xff]
    %v1255 = vld [vmem:[#allocation5 + $0x2c0] sm:$0xff]
    %v1256 = vld [vmem:[#allocation5 + $0x2c8] sm:$0xff]
    %v1257 = vld [vmem:[#allocation5 + $0x2d0] sm:$0xff]
    %v1258 = vld [vmem:[#allocation5 + $0x2d8] sm:$0xff]
    %v1259 = vld [vmem:[#allocation5 + $0x2e0] sm:$0xff]
    %v1260 = vld [vmem:[#allocation5 + $0x2e8] sm:$0xff]
    %v1261 = vld [vmem:[#allocation5 + $0x2f0] sm:$0xff]
    %v1262 = vld [vmem:[#allocation5 + $0x2f8] sm:$0xff]
    %v1263 = vld [vmem:[#allocation5 + $0x300] sm:$0xff]
    %v1264 = vld [vmem:[#allocation5 + $0x308] sm:$0xff]
    %v1265 = vld [vmem:[#allocation5 + $0x310] sm:$0xff]
    %v1266 = vld [vmem:[#allocation5 + $0x318] sm:$0xff]
    %v1267 = vld [vmem:[#allocation5 + $0x320] sm:$0xff]
    %v1268 = vld [vmem:[#allocation5 + $0x328] sm:$0xff]
    %v1269 = vld [vmem:[#allocation5 + $0x330] sm:$0xff]
    %v1270 = vld [vmem:[#allocation5 + $0x338] sm:$0xff]
    %v1271 = vld [vmem:[#allocation5 + $0x340] sm:$0xff]
    %v1272 = vld [vmem:[#allocation5 + $0x348] sm:$0xff]
    %v1273 = vld [vmem:[#allocation5 + $0x350] sm:$0xff]
    %v1274 = vld [vmem:[#allocation5 + $0x358] sm:$0xff]
    %v1275 = vld [vmem:[#allocation5 + $0x360] sm:$0xff]
    %v1276 = vld [vmem:[#allocation5 + $0x368] sm:$0xff]
    %v1277 = vld [vmem:[#allocation5 + $0x370] sm:$0xff]
    %v1278 = vld [vmem:[#allocation5 + $0x378] sm:$0xff]
    %v1279 = vld [vmem:[#allocation5 + $0x380] sm:$0xff]
    %v1280 = vld [vmem:[#allocation5 + $0x388] sm:$0xff]
    %v1281 = vld [vmem:[#allocation5 + $0x390] sm:$0xff]
    %v1282 = vld [vmem:[#allocation5 + $0x398] sm:$0xff]
    %v1283 = vld [vmem:[#allocation5 + $0x3a0] sm:$0xff]
    %v1284 = vld [vmem:[#allocation5 + $0x3a8] sm:$0xff]
    %v1285 = vld [vmem:[#allocation5 + $0x3b0] sm:$0xff]
    %v1286 = vld [vmem:[#allocation5 + $0x3b8] sm:$0xff]
    %v1287 = vld [vmem:[#allocation5 + $0x3c0] sm:$0xff]
    %v1288 = vld [vmem:[#allocation5 + $0x3c8] sm:$0xff]
    %v1289 = vld [vmem:[#allocation5 + $0x3d0] sm:$0xff]
    %v1290 = vld [vmem:[#allocation5 + $0x3d8] sm:$0xff]
    %v1291 = vld [vmem:[#allocation5 + $0x3e0] sm:$0xff]
    %v1292 = vld [vmem:[#allocation5 + $0x3e8] sm:$0xff]
    %v1293 = vld [vmem:[#allocation5 + $0x3f0] sm:$0xff]
    %v1294 = vld [vmem:[#allocation5 + $0x3f8] sm:$0xff]
    %v1295 = vld [vmem:[%s6] sm:$0xf]
    %v1297 = vlaneseq
    %v1298 = vshrl.u32 %v1297, 7
    %v1299 = vsub.s32 0, %v1298
    %v1300 = vrot.slane %v1295, %v1299
    %v1301 = vlaneseq
    %v1302 = vshrl.u32 %v1301, 7
    %v1303 = vsub.s32 1, %v1302
    %v1304 = vrot.slane %v1295, %v1303
    %v1305 = vlaneseq
    %v1306 = vshrl.u32 %v1305, 7
    %v1307 = vsub.s32 2, %v1306
    %v1308 = vrot.slane %v1295, %v1307
    %v1309 = vlaneseq
    %v1310 = vshrl.u32 %v1309, 7
    %v1311 = vsub.s32 3, %v1310
    %v1312 = vrot.slane %v1295, %v1311
    %v1445 = vunpack.c.l.b16 %v1167
    %v1446 = vunpack.c.h.b16 %v1167
    %v1447 = vunpack.c.l.b16 %v1168
    %v1448 = vunpack.c.h.b16 %v1168
    %v1449 = vunpack.c.l.b16 %v1169
    %v1450 = vunpack.c.h.b16 %v1169
    %v1451 = vunpack.c.l.b16 %v1170
    %v1452 = vunpack.c.h.b16 %v1170
    %v1453 = vunpack.c.l.b16 %v1171
    %v1454 = vunpack.c.h.b16 %v1171
    %v1455 = vunpack.c.l.b16 %v1172
    %v1456 = vunpack.c.h.b16 %v1172
    %v1457 = vunpack.c.l.b16 %v1173
    %v1458 = vunpack.c.h.b16 %v1173
    %v1459 = vunpack.c.l.b16 %v1174
    %v1460 = vunpack.c.h.b16 %v1174
    %v1461 = vunpack.c.l.b16 %v1175
    %v1462 = vunpack.c.h.b16 %v1175
    %v1463 = vunpack.c.l.b16 %v1176
    %v1464 = vunpack.c.h.b16 %v1176
    %v1465 = vunpack.c.l.b16 %v1177
    %v1466 = vunpack.c.h.b16 %v1177
    %v1467 = vunpack.c.l.b16 %v1178
    %v1468 = vunpack.c.h.b16 %v1178
    %v1469 = vunpack.c.l.b16 %v1179
    %v1470 = vunpack.c.h.b16 %v1179
    %v1471 = vunpack.c.l.b16 %v1180
    %v1472 = vunpack.c.h.b16 %v1180
    %v1473 = vunpack.c.l.b16 %v1181
    %v1474 = vunpack.c.h.b16 %v1181
    %v1475 = vunpack.c.l.b16 %v1182
    %v1476 = vunpack.c.h.b16 %v1182
    %v1477 = vunpack.c.l.b16 %v1183
    %v1478 = vunpack.c.h.b16 %v1183
    %v1479 = vunpack.c.l.b16 %v1184
    %v1480 = vunpack.c.h.b16 %v1184
    %v1481 = vunpack.c.l.b16 %v1185
    %v1482 = vunpack.c.h.b16 %v1185
    %v1483 = vunpack.c.l.b16 %v1186
    %v1484 = vunpack.c.h.b16 %v1186
    %v1485 = vunpack.c.l.b16 %v1187
    %v1486 = vunpack.c.h.b16 %v1187
    %v1487 = vunpack.c.l.b16 %v1188
    %v1488 = vunpack.c.h.b16 %v1188
    %v1489 = vunpack.c.l.b16 %v1189
    %v1490 = vunpack.c.h.b16 %v1189
    %v1491 = vunpack.c.l.b16 %v1190
    %v1492 = vunpack.c.h.b16 %v1190
    %v1493 = vunpack.c.l.b16 %v1191
    %v1494 = vunpack.c.h.b16 %v1191
    %v1495 = vunpack.c.l.b16 %v1192
    %v1496 = vunpack.c.h.b16 %v1192
    %v1497 = vunpack.c.l.b16 %v1193
    %v1498 = vunpack.c.h.b16 %v1193
    %v1499 = vunpack.c.l.b16 %v1194
    %v1500 = vunpack.c.h.b16 %v1194
    %v1501 = vunpack.c.l.b16 %v1195
    %v1502 = vunpack.c.h.b16 %v1195
    %v1503 = vunpack.c.l.b16 %v1196
    %v1504 = vunpack.c.h.b16 %v1196
    %v1505 = vunpack.c.l.b16 %v1197
    %v1506 = vunpack.c.h.b16 %v1197
    %v1507 = vunpack.c.l.b16 %v1198
    %v1508 = vunpack.c.h.b16 %v1198
    %v1509 = vunpack.c.l.b16 %v1199
    %v1510 = vunpack.c.h.b16 %v1199
    %v1511 = vunpack.c.l.b16 %v1200
    %v1512 = vunpack.c.h.b16 %v1200
    %v1513 = vunpack.c.l.b16 %v1201
    %v1514 = vunpack.c.h.b16 %v1201
    %v1515 = vunpack.c.l.b16 %v1202
    %v1516 = vunpack.c.h.b16 %v1202
    %v1517 = vunpack.c.l.b16 %v1203
    %v1518 = vunpack.c.h.b16 %v1203
    %v1519 = vunpack.c.l.b16 %v1204
    %v1520 = vunpack.c.h.b16 %v1204
    %v1521 = vunpack.c.l.b16 %v1205
    %v1522 = vunpack.c.h.b16 %v1205
    %v1523 = vunpack.c.l.b16 %v1206
    %v1524 = vunpack.c.h.b16 %v1206
    %v1525 = vunpack.c.l.b16 %v1207
    %v1526 = vunpack.c.h.b16 %v1207
    %v1527 = vunpack.c.l.b16 %v1208
    %v1528 = vunpack.c.h.b16 %v1208
    %v1529 = vunpack.c.l.b16 %v1209
    %v1530 = vunpack.c.h.b16 %v1209
    %v1531 = vunpack.c.l.b16 %v1210
    %v1532 = vunpack.c.h.b16 %v1210
    %v1533 = vunpack.c.l.b16 %v1211
    %v1534 = vunpack.c.h.b16 %v1211
    %v1535 = vunpack.c.l.b16 %v1212
    %v1536 = vunpack.c.h.b16 %v1212
    %v1537 = vunpack.c.l.b16 %v1213
    %v1538 = vunpack.c.h.b16 %v1213
    %v1539 = vunpack.c.l.b16 %v1214
    %v1540 = vunpack.c.h.b16 %v1214
    %v1541 = vunpack.c.l.b16 %v1215
    %v1542 = vunpack.c.h.b16 %v1215
    %v1543 = vunpack.c.l.b16 %v1216
    %v1544 = vunpack.c.h.b16 %v1216
    %v1545 = vunpack.c.l.b16 %v1217
    %v1546 = vunpack.c.h.b16 %v1217
    %v1547 = vunpack.c.l.b16 %v1218
    %v1548 = vunpack.c.h.b16 %v1218
    %v1549 = vunpack.c.l.b16 %v1219
    %v1550 = vunpack.c.h.b16 %v1219
    %v1551 = vunpack.c.l.b16 %v1220
    %v1552 = vunpack.c.h.b16 %v1220
    %v1553 = vunpack.c.l.b16 %v1221
    %v1554 = vunpack.c.h.b16 %v1221
    %v1555 = vunpack.c.l.b16 %v1222
    %v1556 = vunpack.c.h.b16 %v1222
    %v1557 = vunpack.c.l.b16 %v1223
    %v1558 = vunpack.c.h.b16 %v1223
    %v1559 = vunpack.c.l.b16 %v1224
    %v1560 = vunpack.c.h.b16 %v1224
    %v1561 = vunpack.c.l.b16 %v1225
    %v1562 = vunpack.c.h.b16 %v1225
    %v1563 = vunpack.c.l.b16 %v1226
    %v1564 = vunpack.c.h.b16 %v1226
    %v1565 = vunpack.c.l.b16 %v1227
    %v1566 = vunpack.c.h.b16 %v1227
    %v1567 = vunpack.c.l.b16 %v1228
    %v1568 = vunpack.c.h.b16 %v1228
    %v1569 = vunpack.c.l.b16 %v1229
    %v1570 = vunpack.c.h.b16 %v1229
    %v1571 = vunpack.c.l.b16 %v1230
    %v1572 = vunpack.c.h.b16 %v1230
    %v1573 = vunpack.c.l.b16 %v1231
    %v1574 = vunpack.c.h.b16 %v1231
    %v1575 = vunpack.c.l.b16 %v1232
    %v1576 = vunpack.c.h.b16 %v1232
    %v1577 = vunpack.c.l.b16 %v1233
    %v1578 = vunpack.c.h.b16 %v1233
    %v1579 = vunpack.c.l.b16 %v1234
    %v1580 = vunpack.c.h.b16 %v1234
    %v1581 = vunpack.c.l.b16 %v1235
    %v1582 = vunpack.c.h.b16 %v1235
    %v1583 = vunpack.c.l.b16 %v1236
    %v1584 = vunpack.c.h.b16 %v1236
    %v1585 = vunpack.c.l.b16 %v1237
    %v1586 = vunpack.c.h.b16 %v1237
    %v1587 = vunpack.c.l.b16 %v1238
    %v1588 = vunpack.c.h.b16 %v1238
    %v1589 = vunpack.c.l.b16 %v1239
    %v1590 = vunpack.c.h.b16 %v1239
    %v1591 = vunpack.c.l.b16 %v1240
    %v1592 = vunpack.c.h.b16 %v1240
    %v1593 = vunpack.c.l.b16 %v1241
    %v1594 = vunpack.c.h.b16 %v1241
    %v1595 = vunpack.c.l.b16 %v1242
    %v1596 = vunpack.c.h.b16 %v1242
    %v1597 = vunpack.c.l.b16 %v1243
    %v1598 = vunpack.c.h.b16 %v1243
    %v1599 = vunpack.c.l.b16 %v1244
    %v1600 = vunpack.c.h.b16 %v1244
    %v1601 = vunpack.c.l.b16 %v1245
    %v1602 = vunpack.c.h.b16 %v1245
    %v1603 = vunpack.c.l.b16 %v1246
    %v1604 = vunpack.c.h.b16 %v1246
    %v1605 = vunpack.c.l.b16 %v1247
    %v1606 = vunpack.c.h.b16 %v1247
    %v1607 = vunpack.c.l.b16 %v1248
    %v1608 = vunpack.c.h.b16 %v1248
    %v1609 = vunpack.c.l.b16 %v1249
    %v1610 = vunpack.c.h.b16 %v1249
    %v1611 = vunpack.c.l.b16 %v1250
    %v1612 = vunpack.c.h.b16 %v1250
    %v1613 = vunpack.c.l.b16 %v1251
    %v1614 = vunpack.c.h.b16 %v1251
    %v1615 = vunpack.c.l.b16 %v1252
    %v1616 = vunpack.c.h.b16 %v1252
    %v1617 = vunpack.c.l.b16 %v1253
    %v1618 = vunpack.c.h.b16 %v1253
    %v1619 = vunpack.c.l.b16 %v1254
    %v1620 = vunpack.c.h.b16 %v1254
    %v1621 = vunpack.c.l.b16 %v1255
    %v1622 = vunpack.c.h.b16 %v1255
    %v1623 = vunpack.c.l.b16 %v1256
    %v1624 = vunpack.c.h.b16 %v1256
    %v1625 = vunpack.c.l.b16 %v1257
    %v1626 = vunpack.c.h.b16 %v1257
    %v1627 = vunpack.c.l.b16 %v1258
    %v1628 = vunpack.c.h.b16 %v1258
    %v1629 = vunpack.c.l.b16 %v1259
    %v1630 = vunpack.c.h.b16 %v1259
    %v1631 = vunpack.c.l.b16 %v1260
    %v1632 = vunpack.c.h.b16 %v1260
    %v1633 = vunpack.c.l.b16 %v1261
    %v1634 = vunpack.c.h.b16 %v1261
    %v1635 = vunpack.c.l.b16 %v1262
    %v1636 = vunpack.c.h.b16 %v1262
    %v1637 = vunpack.c.l.b16 %v1263
    %v1638 = vunpack.c.h.b16 %v1263
    %v1639 = vunpack.c.l.b16 %v1264
    %v1640 = vunpack.c.h.b16 %v1264
    %v1641 = vunpack.c.l.b16 %v1265
    %v1642 = vunpack.c.h.b16 %v1265
    %v1643 = vunpack.c.l.b16 %v1266
    %v1644 = vunpack.c.h.b16 %v1266
    %v1645 = vunpack.c.l.b16 %v1267
    %v1646 = vunpack.c.h.b16 %v1267
    %v1647 = vunpack.c.l.b16 %v1268
    %v1648 = vunpack.c.h.b16 %v1268
    %v1649 = vunpack.c.l.b16 %v1269
    %v1650 = vunpack.c.h.b16 %v1269
    %v1651 = vunpack.c.l.b16 %v1270
    %v1652 = vunpack.c.h.b16 %v1270
    %v1653 = vunpack.c.l.b16 %v1271
    %v1654 = vunpack.c.h.b16 %v1271
    %v1655 = vunpack.c.l.b16 %v1272
    %v1656 = vunpack.c.h.b16 %v1272
    %v1657 = vunpack.c.l.b16 %v1273
    %v1658 = vunpack.c.h.b16 %v1273
    %v1659 = vunpack.c.l.b16 %v1274
    %v1660 = vunpack.c.h.b16 %v1274
    %v1661 = vunpack.c.l.b16 %v1275
    %v1662 = vunpack.c.h.b16 %v1275
    %v1663 = vunpack.c.l.b16 %v1276
    %v1664 = vunpack.c.h.b16 %v1276
    %v1665 = vunpack.c.l.b16 %v1277
    %v1666 = vunpack.c.h.b16 %v1277
    %v1667 = vunpack.c.l.b16 %v1278
    %v1668 = vunpack.c.h.b16 %v1278
    %v1669 = vunpack.c.l.b16 %v1279
    %v1670 = vunpack.c.h.b16 %v1279
    %v1671 = vunpack.c.l.b16 %v1280
    %v1672 = vunpack.c.h.b16 %v1280
    %v1673 = vunpack.c.l.b16 %v1281
    %v1674 = vunpack.c.h.b16 %v1281
    %v1675 = vunpack.c.l.b16 %v1282
    %v1676 = vunpack.c.h.b16 %v1282
    %v1677 = vunpack.c.l.b16 %v1283
    %v1678 = vunpack.c.h.b16 %v1283
    %v1679 = vunpack.c.l.b16 %v1284
    %v1680 = vunpack.c.h.b16 %v1284
    %v1681 = vunpack.c.l.b16 %v1285
    %v1682 = vunpack.c.h.b16 %v1285
    %v1683 = vunpack.c.l.b16 %v1286
    %v1684 = vunpack.c.h.b16 %v1286
    %v1685 = vunpack.c.l.b16 %v1287
    %v1686 = vunpack.c.h.b16 %v1287
    %v1687 = vunpack.c.l.b16 %v1288
    %v1688 = vunpack.c.h.b16 %v1288
    %v1689 = vunpack.c.l.b16 %v1289
    %v1690 = vunpack.c.h.b16 %v1289
    %v1691 = vunpack.c.l.b16 %v1290
    %v1692 = vunpack.c.h.b16 %v1290
    %v1693 = vunpack.c.l.b16 %v1291
    %v1694 = vunpack.c.h.b16 %v1291
    %v1695 = vunpack.c.l.b16 %v1292
    %v1696 = vunpack.c.h.b16 %v1292
    %v1697 = vunpack.c.l.b16 %v1293
    %v1698 = vunpack.c.h.b16 %v1293
    %v1699 = vunpack.c.l.b16 %v1294
    %v1700 = vunpack.c.h.b16 %v1294
    %v1701 = vpack.c.b16 %v1449, %v1445
    %v1702 = vpack.c.b16 %v1450, %v1446
    %v1703 = vpack.c.b16 %v1451, %v1447
    %v1704 = vpack.c.b16 %v1452, %v1448
    %v1705 = vpack.c.b16 %v1457, %v1453
    %v1706 = vpack.c.b16 %v1458, %v1454
    %v1707 = vpack.c.b16 %v1459, %v1455
    %v1708 = vpack.c.b16 %v1460, %v1456
    %v1709 = vpack.c.b16 %v1465, %v1461
    %v1710 = vpack.c.b16 %v1466, %v1462
    %v1711 = vpack.c.b16 %v1467, %v1463
    %v1712 = vpack.c.b16 %v1468, %v1464
    %v1713 = vpack.c.b16 %v1473, %v1469
    %v1714 = vpack.c.b16 %v1474, %v1470
    %v1715 = vpack.c.b16 %v1475, %v1471
    %v1716 = vpack.c.b16 %v1476, %v1472
    %v1717 = vpack.c.b16 %v1481, %v1477
    %v1718 = vpack.c.b16 %v1482, %v1478
    %v1719 = vpack.c.b16 %v1483, %v1479
    %v1720 = vpack.c.b16 %v1484, %v1480
    %v1721 = vpack.c.b16 %v1489, %v1485
    %v1722 = vpack.c.b16 %v1490, %v1486
    %v1723 = vpack.c.b16 %v1491, %v1487
    %v1724 = vpack.c.b16 %v1492, %v1488
    %v1725 = vpack.c.b16 %v1497, %v1493
    %v1726 = vpack.c.b16 %v1498, %v1494
    %v1727 = vpack.c.b16 %v1499, %v1495
    %v1728 = vpack.c.b16 %v1500, %v1496
    %v1729 = vpack.c.b16 %v1505, %v1501
    %v1730 = vpack.c.b16 %v1506, %v1502
    %v1731 = vpack.c.b16 %v1507, %v1503
    %v1732 = vpack.c.b16 %v1508, %v1504
    %v1733 = vpack.c.b16 %v1513, %v1509
    %v1734 = vpack.c.b16 %v1514, %v1510
    %v1735 = vpack.c.b16 %v1515, %v1511
    %v1736 = vpack.c.b16 %v1516, %v1512
    %v1737 = vpack.c.b16 %v1521, %v1517
    %v1738 = vpack.c.b16 %v1522, %v1518
    %v1739 = vpack.c.b16 %v1523, %v1519
    %v1740 = vpack.c.b16 %v1524, %v1520
    %v1741 = vpack.c.b16 %v1529, %v1525
    %v1742 = vpack.c.b16 %v1530, %v1526
    %v1743 = vpack.c.b16 %v1531, %v1527
    %v1744 = vpack.c.b16 %v1532, %v1528
    %v1745 = vpack.c.b16 %v1537, %v1533
    %v1746 = vpack.c.b16 %v1538, %v1534
    %v1747 = vpack.c.b16 %v1539, %v1535
    %v1748 = vpack.c.b16 %v1540, %v1536
    %v1749 = vpack.c.b16 %v1545, %v1541
    %v1750 = vpack.c.b16 %v1546, %v1542
    %v1751 = vpack.c.b16 %v1547, %v1543
    %v1752 = vpack.c.b16 %v1548, %v1544
    %v1753 = vpack.c.b16 %v1553, %v1549
    %v1754 = vpack.c.b16 %v1554, %v1550
    %v1755 = vpack.c.b16 %v1555, %v1551
    %v1756 = vpack.c.b16 %v1556, %v1552
    %v1757 = vpack.c.b16 %v1561, %v1557
    %v1758 = vpack.c.b16 %v1562, %v1558
    %v1759 = vpack.c.b16 %v1563, %v1559
    %v1760 = vpack.c.b16 %v1564, %v1560
    %v1761 = vpack.c.b16 %v1569, %v1565
    %v1762 = vpack.c.b16 %v1570, %v1566
    %v1763 = vpack.c.b16 %v1571, %v1567
    %v1764 = vpack.c.b16 %v1572, %v1568
    %v1765 = vpack.c.b16 %v1577, %v1573
    %v1766 = vpack.c.b16 %v1578, %v1574
    %v1767 = vpack.c.b16 %v1579, %v1575
    %v1768 = vpack.c.b16 %v1580, %v1576
    %v1769 = vpack.c.b16 %v1585, %v1581
    %v1770 = vpack.c.b16 %v1586, %v1582
    %v1771 = vpack.c.b16 %v1587, %v1583
    %v1772 = vpack.c.b16 %v1588, %v1584
    %v1773 = vpack.c.b16 %v1593, %v1589
    %v1774 = vpack.c.b16 %v1594, %v1590
    %v1775 = vpack.c.b16 %v1595, %v1591
    %v1776 = vpack.c.b16 %v1596, %v1592
    %v1777 = vpack.c.b16 %v1601, %v1597
    %v1778 = vpack.c.b16 %v1602, %v1598
    %v1779 = vpack.c.b16 %v1603, %v1599
    %v1780 = vpack.c.b16 %v1604, %v1600
    %v1781 = vpack.c.b16 %v1609, %v1605
    %v1782 = vpack.c.b16 %v1610, %v1606
    %v1783 = vpack.c.b16 %v1611, %v1607
    %v1784 = vpack.c.b16 %v1612, %v1608
    %v1785 = vpack.c.b16 %v1617, %v1613
    %v1786 = vpack.c.b16 %v1618, %v1614
    %v1787 = vpack.c.b16 %v1619, %v1615
    %v1788 = vpack.c.b16 %v1620, %v1616
    %v1789 = vpack.c.b16 %v1625, %v1621
    %v1790 = vpack.c.b16 %v1626, %v1622
    %v1791 = vpack.c.b16 %v1627, %v1623
    %v1792 = vpack.c.b16 %v1628, %v1624
    %v1793 = vpack.c.b16 %v1633, %v1629
    %v1794 = vpack.c.b16 %v1634, %v1630
    %v1795 = vpack.c.b16 %v1635, %v1631
    %v1796 = vpack.c.b16 %v1636, %v1632
    %v1797 = vpack.c.b16 %v1641, %v1637
    %v1798 = vpack.c.b16 %v1642, %v1638
    %v1799 = vpack.c.b16 %v1643, %v1639
    %v1800 = vpack.c.b16 %v1644, %v1640
    %v1801 = vpack.c.b16 %v1649, %v1645
    %v1802 = vpack.c.b16 %v1650, %v1646
    %v1803 = vpack.c.b16 %v1651, %v1647
    %v1804 = vpack.c.b16 %v1652, %v1648
    %v1805 = vpack.c.b16 %v1657, %v1653
    %v1806 = vpack.c.b16 %v1658, %v1654
    %v1807 = vpack.c.b16 %v1659, %v1655
    %v1808 = vpack.c.b16 %v1660, %v1656
    %v1809 = vpack.c.b16 %v1665, %v1661
    %v1810 = vpack.c.b16 %v1666, %v1662
    %v1811 = vpack.c.b16 %v1667, %v1663
    %v1812 = vpack.c.b16 %v1668, %v1664
    %v1813 = vpack.c.b16 %v1673, %v1669
    %v1814 = vpack.c.b16 %v1674, %v1670
    %v1815 = vpack.c.b16 %v1675, %v1671
    %v1816 = vpack.c.b16 %v1676, %v1672
    %v1817 = vpack.c.b16 %v1681, %v1677
    %v1818 = vpack.c.b16 %v1682, %v1678
    %v1819 = vpack.c.b16 %v1683, %v1679
    %v1820 = vpack.c.b16 %v1684, %v1680
    %v1821 = vpack.c.b16 %v1689, %v1685
    %v1822 = vpack.c.b16 %v1690, %v1686
    %v1823 = vpack.c.b16 %v1691, %v1687
    %v1824 = vpack.c.b16 %v1692, %v1688
    %v1825 = vpack.c.b16 %v1697, %v1693
    %v1826 = vpack.c.b16 %v1698, %v1694
    %v1827 = vpack.c.b16 %v1699, %v1695
    %v1828 = vpack.c.b16 %v1700, %v1696
    %1957 = vmatprep.subr.bf16.mxu0 %v1702
    %1958 = vmatpush1.bf16.msra.mxu0 %v1701
    %1959 = vmatprep.subr.bf16.mxu0 %v1706
    %1960 = vmatpush1.bf16.msra.mxu0 %v1705
    %1961 = vmatprep.subr.bf16.mxu0 %v1710
    %1962 = vmatpush1.bf16.msra.mxu0 %v1709
    %1963 = vmatprep.subr.bf16.mxu0 %v1714
    %1964 = vmatpush1.bf16.msra.mxu0 %v1713
    %1965 = vmatprep.subr.bf16.mxu0 %v1718
    %1966 = vmatpush1.bf16.msra.mxu0 %v1717
    %1967 = vmatprep.subr.bf16.mxu0 %v1722
    %1968 = vmatpush1.bf16.msra.mxu0 %v1721
    %1969 = vmatprep.subr.bf16.mxu0 %v1726
    %1970 = vmatpush1.bf16.msra.mxu0 %v1725
    %1971 = vmatprep.subr.bf16.mxu0 %v1730
    %1972 = vmatpush1.bf16.msra.mxu0 %v1729
    %1973 = vmatprep.subr.bf16.mxu0 %v1734
    %1974 = vmatpush1.bf16.msra.mxu0 %v1733
    %1975 = vmatprep.subr.bf16.mxu0 %v1738
    %1976 = vmatpush1.bf16.msra.mxu0 %v1737
    %1977 = vmatprep.subr.bf16.mxu0 %v1742
    %1978 = vmatpush1.bf16.msra.mxu0 %v1741
    %1979 = vmatprep.subr.bf16.mxu0 %v1746
    %1980 = vmatpush1.bf16.msra.mxu0 %v1745
    %1981 = vmatprep.subr.bf16.mxu0 %v1750
    %1982 = vmatpush1.bf16.msra.mxu0 %v1749
    %1983 = vmatprep.subr.bf16.mxu0 %v1754
    %1984 = vmatpush1.bf16.msra.mxu0 %v1753
    %1985 = vmatprep.subr.bf16.mxu0 %v1758
    %1986 = vmatpush1.bf16.msra.mxu0 %v1757
    %1987 = vmatprep.subr.bf16.mxu0 %v1762
    %1988 = vmatpush1.bf16.msra.mxu0 %v1761
    %1989 = vmatprep.mubr.bf16.mxu0 %v1164
    %1990 = vmatmul.mubr.bf16.gmra.mrb[0].mxu0 %v1163
    %v1991 = vpop.f32.mrb[0].mxu0
    %v1992 = vadd.f32 %v1300, %v1991
    %v1993 = vpop.f32.mrb[0].mxu0
    %v1994 = vadd.f32 %v1304, %v1993
    %v1995 = vpop.f32.mrb[0].mxu0
    %v1996 = vpop.f32.mrb[0].mxu0
    %1997 = vdwg.mxu0
    %1998 = vmatprep.subr.bf16.mxu0 %v1766
    %1999 = vmatpush1.bf16.msra.mxu0 %v1765
    %2000 = vmatprep.subr.bf16.mxu0 %v1770
    %2001 = vmatpush1.bf16.msra.mxu0 %v1769
    %2002 = vmatprep.subr.bf16.mxu0 %v1774
    %2003 = vmatpush1.bf16.msra.mxu0 %v1773
    %2004 = vmatprep.subr.bf16.mxu0 %v1778
    %2005 = vmatpush1.bf16.msra.mxu0 %v1777
    %2006 = vmatprep.subr.bf16.mxu0 %v1782
    %2007 = vmatpush1.bf16.msra.mxu0 %v1781
    %2008 = vmatprep.subr.bf16.mxu0 %v1786
    %2009 = vmatpush1.bf16.msra.mxu0 %v1785
    %2010 = vmatprep.subr.bf16.mxu0 %v1790
    %2011 = vmatpush1.bf16.msra.mxu0 %v1789
    %2012 = vmatprep.subr.bf16.mxu0 %v1794
    %2013 = vmatpush1.bf16.msra.mxu0 %v1793
    %2014 = vmatprep.subr.bf16.mxu0 %v1798
    %2015 = vmatpush1.bf16.msra.mxu0 %v1797
    %2016 = vmatprep.subr.bf16.mxu0 %v1802
    %2017 = vmatpush1.bf16.msra.mxu0 %v1801
    %2018 = vmatprep.subr.bf16.mxu0 %v1806
    %2019 = vmatpush1.bf16.msra.mxu0 %v1805
    %2020 = vmatprep.subr.bf16.mxu0 %v1810
    %2021 = vmatpush1.bf16.msra.mxu0 %v1809
    %2022 = vmatprep.subr.bf16.mxu0 %v1814
    %2023 = vmatpush1.bf16.msra.mxu0 %v1813
    %2024 = vmatprep.subr.bf16.mxu0 %v1818
    %2025 = vmatpush1.bf16.msra.mxu0 %v1817
    %2026 = vmatprep.subr.bf16.mxu0 %v1822
    %2027 = vmatpush1.bf16.msra.mxu0 %v1821
    %2028 = vmatprep.subr.bf16.mxu0 %v1826
    %2029 = vmatpush1.bf16.msra.mxu0 %v1825
    %2030 = vmatprep.mubr.bf16.mxu0 %v1166
    %2031 = vmatmul.mubr.bf16.gmra.mrb[0].mxu0 %v1165
    %v2032 = vpop.f32.mrb[0].mxu0
    %v2033 = vadd.f32 %v1992, %v2032
    %v2034 = vpop.f32.mrb[0].mxu0
    %v2035 = vadd.f32 %v1994, %v2034
    %v2036 = vpop.f32.mrb[0].mxu0
    %v2037 = vpop.f32.mrb[0].mxu0
    %2038 = vdwg.mxu0
    %2039 = vmatprep.subr.bf16.mxu0 %v1704
    %2040 = vmatpush1.bf16.msra.mxu0 %v1703
    %2041 = vmatprep.subr.bf16.mxu0 %v1708
    %2042 = vmatpush1.bf16.msra.mxu0 %v1707
    %2043 = vmatprep.subr.bf16.mxu0 %v1712
    %2044 = vmatpush1.bf16.msra.mxu0 %v1711
    %2045 = vmatprep.subr.bf16.mxu0 %v1716
    %2046 = vmatpush1.bf16.msra.mxu0 %v1715
    %2047 = vmatprep.subr.bf16.mxu0 %v1720
    %2048 = vmatpush1.bf16.msra.mxu0 %v1719
    %2049 = vmatprep.subr.bf16.mxu0 %v1724
    %2050 = vmatpush1.bf16.msra.mxu0 %v1723
    %2051 = vmatprep.subr.bf16.mxu0 %v1728
    %2052 = vmatpush1.bf16.msra.mxu0 %v1727
    %2053 = vmatprep.subr.bf16.mxu0 %v1732
    %2054 = vmatpush1.bf16.msra.mxu0 %v1731
    %2055 = vmatprep.subr.bf16.mxu0 %v1736
    %2056 = vmatpush1.bf16.msra.mxu0 %v1735
    %2057 = vmatprep.subr.bf16.mxu0 %v1740
    %2058 = vmatpush1.bf16.msra.mxu0 %v1739
    %2059 = vmatprep.subr.bf16.mxu0 %v1744
    %2060 = vmatpush1.bf16.msra.mxu0 %v1743
    %2061 = vmatprep.subr.bf16.mxu0 %v1748
    %2062 = vmatpush1.bf16.msra.mxu0 %v1747
    %2063 = vmatprep.subr.bf16.mxu0 %v1752
    %2064 = vmatpush1.bf16.msra.mxu0 %v1751
    %2065 = vmatprep.subr.bf16.mxu0 %v1756
    %2066 = vmatpush1.bf16.msra.mxu0 %v1755
    %2067 = vmatprep.subr.bf16.mxu0 %v1760
    %2068 = vmatpush1.bf16.msra.mxu0 %v1759
    %2069 = vmatprep.subr.bf16.mxu0 %v1764
    %2070 = vmatpush1.bf16.msra.mxu0 %v1763
    %2071 = vmatprep.mubr.bf16.mxu0 %v1164
    %2072 = vmatmul.mubr.bf16.gmra.mrb[0].mxu0 %v1163
    %v2073 = vpop.f32.mrb[0].mxu0
    %v2074 = vadd.f32 %v1308, %v2073
    %v2075 = vpop.f32.mrb[0].mxu0
    %v2076 = vadd.f32 %v1312, %v2075
    %v2077 = vpop.f32.mrb[0].mxu0
    %v2078 = vpop.f32.mrb[0].mxu0
    %2079 = vdwg.mxu0
    %2080 = vmatprep.subr.bf16.mxu0 %v1768
    %2081 = vmatpush1.bf16.msra.mxu0 %v1767
    %2082 = vmatprep.subr.bf16.mxu0 %v1772
    %2083 = vmatpush1.bf16.msra.mxu0 %v1771
    %2084 = vmatprep.subr.bf16.mxu0 %v1776
    %2085 = vmatpush1.bf16.msra.mxu0 %v1775
    %2086 = vmatprep.subr.bf16.mxu0 %v1780
    %2087 = vmatpush1.bf16.msra.mxu0 %v1779
    %2088 = vmatprep.subr.bf16.mxu0 %v1784
    %2089 = vmatpush1.bf16.msra.mxu0 %v1783
    %2090 = vmatprep.subr.bf16.mxu0 %v1788
    %2091 = vmatpush1.bf16.msra.mxu0 %v1787
    %2092 = vmatprep.subr.bf16.mxu0 %v1792
    %2093 = vmatpush1.bf16.msra.mxu0 %v1791
    %2094 = vmatprep.subr.bf16.mxu0 %v1796
    %2095 = vmatpush1.bf16.msra.mxu0 %v1795
    %2096 = vmatprep.subr.bf16.mxu0 %v1800
    %2097 = vmatpush1.bf16.msra.mxu0 %v1799
    %2098 = vmatprep.subr.bf16.mxu0 %v1804
    %2099 = vmatpush1.bf16.msra.mxu0 %v1803
    %2100 = vmatprep.subr.bf16.mxu0 %v1808
    %2101 = vmatpush1.bf16.msra.mxu0 %v1807
    %2102 = vmatprep.subr.bf16.mxu0 %v1812
    %2103 = vmatpush1.bf16.msra.mxu0 %v1811
    %2104 = vmatprep.subr.bf16.mxu0 %v1816
    %2105 = vmatpush1.bf16.msra.mxu0 %v1815
    %2106 = vmatprep.subr.bf16.mxu0 %v1820
    %2107 = vmatpush1.bf16.msra.mxu0 %v1819
    %2108 = vmatprep.subr.bf16.mxu0 %v1824
    %2109 = vmatpush1.bf16.msra.mxu0 %v1823
    %2110 = vmatprep.subr.bf16.mxu0 %v1828
    %2111 = vmatpush1.bf16.msra.mxu0 %v1827
    %2112 = vmatprep.mubr.bf16.mxu0 %v1166
    %2113 = vmatmul.mubr.bf16.gmra.mrb[0].mxu0 %v1165
    %v2114 = vpop.f32.mrb[0].mxu0
    %v2115 = vadd.f32 %v2074, %v2114
    %v2116 = vpop.f32.mrb[0].mxu0
    %v2117 = vadd.f32 %v2076, %v2116
    %v2118 = vpop.f32.mrb[0].mxu0
    %v2119 = vpop.f32.mrb[0].mxu0
    %2120 = vdwg.mxu0
    %v2121 = vmax.f32 %v2033, 0.0
    %v2122 = vmax.f32 %v2035, 0.0
    %v2123 = vmax.f32 %v2115, 0.0
    %v2124 = vmax.f32 %v2117, 0.0
    %v2125 = vpack.c.bf16 %v2121, %v2121
    %v2126 = vpack.c.bf16 %v2122, %v2122
    %v2127 = vpack.c.bf16 %v2123, %v2123
    %v2128 = vpack.c.bf16 %v2124, %v2124
    %v2129 = vld [vmem:[#allocation7] sm:$0xf]
    %v2130 = vld [vmem:[#allocation7 + $0x4] sm:$0xf]
    %v2131 = vld [vmem:[#allocation7 + $0x8] sm:$0xf]
    %v2132 = vld [vmem:[#allocation7 + $0xc] sm:$0xf]
    %v2133 = vld [vmem:[#allocation7 + $0x10] sm:$0xf]
    %v2134 = vld [vmem:[#allocation7 + $0x14] sm:$0xf]
    %v2135 = vld [vmem:[#allocation7 + $0x18] sm:$0xf]
    %v2136 = vld [vmem:[#allocation7 + $0x1c] sm:$0xf]
    %v2137 = vld [vmem:[#allocation7 + $0x20] sm:$0xf]
    %v2138 = vld [vmem:[#allocation7 + $0x24] sm:$0xf]
    %v2139 = vld [vmem:[#allocation7 + $0x28] sm:$0xf]
    %v2140 = vld [vmem:[#allocation7 + $0x2c] sm:$0xf]
    %v2141 = vld [vmem:[#allocation7 + $0x30] sm:$0xf]
    %v2142 = vld [vmem:[#allocation7 + $0x34] sm:$0xf]
    %v2143 = vld [vmem:[#allocation7 + $0x38] sm:$0xf]
    %v2144 = vld [vmem:[#allocation7 + $0x3c] sm:$0xf]
    %v2145 = vld [vmem:[#allocation7 + $0x40] sm:$0xf]
    %v2146 = vld [vmem:[#allocation7 + $0x44] sm:$0xf]
    %v2147 = vld [vmem:[#allocation7 + $0x48] sm:$0xf]
    %v2148 = vld [vmem:[#allocation7 + $0x4c] sm:$0xf]
    %v2149 = vld [vmem:[#allocation7 + $0x50] sm:$0xf]
    %v2150 = vld [vmem:[#allocation7 + $0x54] sm:$0xf]
    %v2151 = vld [vmem:[#allocation7 + $0x58] sm:$0xf]
    %v2152 = vld [vmem:[#allocation7 + $0x5c] sm:$0xf]
    %v2153 = vld [vmem:[#allocation7 + $0x60] sm:$0xf]
    %v2154 = vld [vmem:[#allocation7 + $0x64] sm:$0xf]
    %v2155 = vld [vmem:[#allocation7 + $0x68] sm:$0xf]
    %v2156 = vld [vmem:[#allocation7 + $0x6c] sm:$0xf]
    %v2157 = vld [vmem:[#allocation7 + $0x70] sm:$0xf]
    %v2158 = vld [vmem:[#allocation7 + $0x74] sm:$0xf]
    %v2159 = vld [vmem:[#allocation7 + $0x78] sm:$0xf]
    %v2160 = vld [vmem:[#allocation7 + $0x7c] sm:$0xf]
    %v2161 = vld [vmem:[#allocation7 + $0x80] sm:$0xf]
    %v2162 = vld [vmem:[#allocation7 + $0x84] sm:$0xf]
    %v2163 = vld [vmem:[#allocation7 + $0x88] sm:$0xf]
    %v2164 = vld [vmem:[#allocation7 + $0x8c] sm:$0xf]
    %v2165 = vld [vmem:[#allocation7 + $0x90] sm:$0xf]
    %v2166 = vld [vmem:[#allocation7 + $0x94] sm:$0xf]
    %v2167 = vld [vmem:[#allocation7 + $0x98] sm:$0xf]
    %v2168 = vld [vmem:[#allocation7 + $0x9c] sm:$0xf]
    %v2169 = vld [vmem:[#allocation7 + $0xa0] sm:$0xf]
    %v2170 = vld [vmem:[#allocation7 + $0xa4] sm:$0xf]
    %v2171 = vld [vmem:[#allocation7 + $0xa8] sm:$0xf]
    %v2172 = vld [vmem:[#allocation7 + $0xac] sm:$0xf]
    %v2173 = vld [vmem:[#allocation7 + $0xb0] sm:$0xf]
    %v2174 = vld [vmem:[#allocation7 + $0xb4] sm:$0xf]
    %v2175 = vld [vmem:[#allocation7 + $0xb8] sm:$0xf]
    %v2176 = vld [vmem:[#allocation7 + $0xbc] sm:$0xf]
    %v2177 = vld [vmem:[#allocation7 + $0xc0] sm:$0xf]
    %v2178 = vld [vmem:[#allocation7 + $0xc4] sm:$0xf]
    %v2179 = vld [vmem:[#allocation7 + $0xc8] sm:$0xf]
    %v2180 = vld [vmem:[#allocation7 + $0xcc] sm:$0xf]
    %v2181 = vld [vmem:[#allocation7 + $0xd0] sm:$0xf]
    %v2182 = vld [vmem:[#allocation7 + $0xd4] sm:$0xf]
    %v2183 = vld [vmem:[#allocation7 + $0xd8] sm:$0xf]
    %v2184 = vld [vmem:[#allocation7 + $0xdc] sm:$0xf]
    %v2185 = vld [vmem:[#allocation7 + $0xe0] sm:$0xf]
    %v2186 = vld [vmem:[#allocation7 + $0xe4] sm:$0xf]
    %v2187 = vld [vmem:[#allocation7 + $0xe8] sm:$0xf]
    %v2188 = vld [vmem:[#allocation7 + $0xec] sm:$0xf]
    %v2189 = vld [vmem:[#allocation7 + $0xf0] sm:$0xf]
    %v2190 = vld [vmem:[#allocation7 + $0xf4] sm:$0xf]
    %v2191 = vld [vmem:[#allocation7 + $0xf8] sm:$0xf]
    %v2192 = vld [vmem:[#allocation7 + $0xfc] sm:$0xf]
    %v2193 = vld [vmem:[%s8] sm:$0x1]
    %v2195 = vlaneseq
    %v2196 = vshrl.u32 %v2195, 7
    %v2197 = vsub.s32 0, %v2196
    %v2198 = vrot.slane %v2193, %v2197
    %v2264 = vunpack.c.l.b16 %v2129
    %v2265 = vunpack.c.l.b16 %v2130
    %v2266 = vunpack.c.l.b16 %v2131
    %v2267 = vunpack.c.l.b16 %v2132
    %v2268 = vunpack.c.l.b16 %v2133
    %v2269 = vunpack.c.l.b16 %v2134
    %v2270 = vunpack.c.l.b16 %v2135
    %v2271 = vunpack.c.l.b16 %v2136
    %v2272 = vunpack.c.l.b16 %v2137
    %v2273 = vunpack.c.l.b16 %v2138
    %v2274 = vunpack.c.l.b16 %v2139
    %v2275 = vunpack.c.l.b16 %v2140
    %v2276 = vunpack.c.l.b16 %v2141
    %v2277 = vunpack.c.l.b16 %v2142
    %v2278 = vunpack.c.l.b16 %v2143
    %v2279 = vunpack.c.l.b16 %v2144
    %v2280 = vunpack.c.l.b16 %v2145
    %v2281 = vunpack.c.l.b16 %v2146
    %v2282 = vunpack.c.l.b16 %v2147
    %v2283 = vunpack.c.l.b16 %v2148
    %v2284 = vunpack.c.l.b16 %v2149
    %v2285 = vunpack.c.l.b16 %v2150
    %v2286 = vunpack.c.l.b16 %v2151
    %v2287 = vunpack.c.l.b16 %v2152
    %v2288 = vunpack.c.l.b16 %v2153
    %v2289 = vunpack.c.l.b16 %v2154
    %v2290 = vunpack.c.l.b16 %v2155
    %v2291 = vunpack.c.l.b16 %v2156
    %v2292 = vunpack.c.l.b16 %v2157
    %v2293 = vunpack.c.l.b16 %v2158
    %v2294 = vunpack.c.l.b16 %v2159
    %v2295 = vunpack.c.l.b16 %v2160
    %v2296 = vunpack.c.l.b16 %v2161
    %v2297 = vunpack.c.l.b16 %v2162
    %v2298 = vunpack.c.l.b16 %v2163
    %v2299 = vunpack.c.l.b16 %v2164
    %v2300 = vunpack.c.l.b16 %v2165
    %v2301 = vunpack.c.l.b16 %v2166
    %v2302 = vunpack.c.l.b16 %v2167
    %v2303 = vunpack.c.l.b16 %v2168
    %v2304 = vunpack.c.l.b16 %v2169
    %v2305 = vunpack.c.l.b16 %v2170
    %v2306 = vunpack.c.l.b16 %v2171
    %v2307 = vunpack.c.l.b16 %v2172
    %v2308 = vunpack.c.l.b16 %v2173
    %v2309 = vunpack.c.l.b16 %v2174
    %v2310 = vunpack.c.l.b16 %v2175
    %v2311 = vunpack.c.l.b16 %v2176
    %v2312 = vunpack.c.l.b16 %v2177
    %v2313 = vunpack.c.l.b16 %v2178
    %v2314 = vunpack.c.l.b16 %v2179
    %v2315 = vunpack.c.l.b16 %v2180
    %v2316 = vunpack.c.l.b16 %v2181
    %v2317 = vunpack.c.l.b16 %v2182
    %v2318 = vunpack.c.l.b16 %v2183
    %v2319 = vunpack.c.l.b16 %v2184
    %v2320 = vunpack.c.l.b16 %v2185
    %v2321 = vunpack.c.l.b16 %v2186
    %v2322 = vunpack.c.l.b16 %v2187
    %v2323 = vunpack.c.l.b16 %v2188
    %v2324 = vunpack.c.l.b16 %v2189
    %v2325 = vunpack.c.l.b16 %v2190
    %v2326 = vunpack.c.l.b16 %v2191
    %v2327 = vunpack.c.l.b16 %v2192
    %v2328 = vpack.c.b16 %v2265, %v2264
    %v2329 = vpack.c.b16 %v2267, %v2266
    %v2330 = vpack.c.b16 %v2269, %v2268
    %v2331 = vpack.c.b16 %v2271, %v2270
    %v2332 = vpack.c.b16 %v2273, %v2272
    %v2333 = vpack.c.b16 %v2275, %v2274
    %v2334 = vpack.c.b16 %v2277, %v2276
    %v2335 = vpack.c.b16 %v2279, %v2278
    %v2336 = vpack.c.b16 %v2281, %v2280
    %v2337 = vpack.c.b16 %v2283, %v2282
    %v2338 = vpack.c.b16 %v2285, %v2284
    %v2339 = vpack.c.b16 %v2287, %v2286
    %v2340 = vpack.c.b16 %v2289, %v2288
    %v2341 = vpack.c.b16 %v2291, %v2290
    %v2342 = vpack.c.b16 %v2293, %v2292
    %v2343 = vpack.c.b16 %v2295, %v2294
    %v2344 = vpack.c.b16 %v2297, %v2296
    %v2345 = vpack.c.b16 %v2299, %v2298
    %v2346 = vpack.c.b16 %v2301, %v2300
    %v2347 = vpack.c.b16 %v2303, %v2302
    %v2348 = vpack.c.b16 %v2305, %v2304
    %v2349 = vpack.c.b16 %v2307, %v2306
    %v2350 = vpack.c.b16 %v2309, %v2308
    %v2351 = vpack.c.b16 %v2311, %v2310
    %v2352 = vpack.c.b16 %v2313, %v2312
    %v2353 = vpack.c.b16 %v2315, %v2314
    %v2354 = vpack.c.b16 %v2317, %v2316
    %v2355 = vpack.c.b16 %v2319, %v2318
    %v2356 = vpack.c.b16 %v2321, %v2320
    %v2357 = vpack.c.b16 %v2323, %v2322
    %v2358 = vpack.c.b16 %v2325, %v2324
    %v2359 = vpack.c.b16 %v2327, %v2326
    %2392 = vmatprep.subr.bf16.mxu0 0
    %2393 = vmatpush1.bf16.msra.mxu0 %v2328
    %2394 = vmatprep.subr.bf16.mxu0 0
    %2395 = vmatpush1.bf16.msra.mxu0 %v2329
    %2396 = vmatprep.subr.bf16.mxu0 0
    %2397 = vmatpush1.bf16.msra.mxu0 %v2330
    %2398 = vmatprep.subr.bf16.mxu0 0
    %2399 = vmatpush1.bf16.msra.mxu0 %v2331
    %2400 = vmatprep.subr.bf16.mxu0 0
    %2401 = vmatpush1.bf16.msra.mxu0 %v2332
    %2402 = vmatprep.subr.bf16.mxu0 0
    %2403 = vmatpush1.bf16.msra.mxu0 %v2333
    %2404 = vmatprep.subr.bf16.mxu0 0
    %2405 = vmatpush1.bf16.msra.mxu0 %v2334
    %2406 = vmatprep.subr.bf16.mxu0 0
    %2407 = vmatpush1.bf16.msra.mxu0 %v2335
    %2408 = vmatprep.subr.bf16.mxu0 0
    %2409 = vmatpush1.bf16.msra.mxu0 %v2336
    %2410 = vmatprep.subr.bf16.mxu0 0
    %2411 = vmatpush1.bf16.msra.mxu0 %v2337
    %2412 = vmatprep.subr.bf16.mxu0 0
    %2413 = vmatpush1.bf16.msra.mxu0 %v2338
    %2414 = vmatprep.subr.bf16.mxu0 0
    %2415 = vmatpush1.bf16.msra.mxu0 %v2339
    %2416 = vmatprep.subr.bf16.mxu0 0
    %2417 = vmatpush1.bf16.msra.mxu0 %v2340
    %2418 = vmatprep.subr.bf16.mxu0 0
    %2419 = vmatpush1.bf16.msra.mxu0 %v2341
    %2420 = vmatprep.subr.bf16.mxu0 0
    %2421 = vmatpush1.bf16.msra.mxu0 %v2342
    %2422 = vmatprep.subr.bf16.mxu0 0
    %2423 = vmatpush1.bf16.msra.mxu0 %v2343
    %2424 = vmatprep.mubr.bf16.mxu0 %v2126
    %2425 = vmatmul.mubr.bf16.gmra.mrb[0].mxu0 %v2125
    %v2426 = vpop.f32.mrb[0].mxu0
    %v2427 = vadd.f32 %v2198, %v2426
    %v2428 = vpop.f32.mrb[0].mxu0
    %v2429 = vpop.f32.mrb[0].mxu0
    %v2430 = vpop.f32.mrb[0].mxu0
    %2431 = vdwg.mxu0
    %2432 = vmatprep.subr.bf16.mxu0 0
    %2433 = vmatpush1.bf16.msra.mxu0 %v2344
    %2434 = vmatprep.subr.bf16.mxu0 0
    %2435 = vmatpush1.bf16.msra.mxu0 %v2345
    %2436 = vmatprep.subr.bf16.mxu0 0
    %2437 = vmatpush1.bf16.msra.mxu0 %v2346
    %2438 = vmatprep.subr.bf16.mxu0 0
    %2439 = vmatpush1.bf16.msra.mxu0 %v2347
    %2440 = vmatprep.subr.bf16.mxu0 0
    %2441 = vmatpush1.bf16.msra.mxu0 %v2348
    %2442 = vmatprep.subr.bf16.mxu0 0
    %2443 = vmatpush1.bf16.msra.mxu0 %v2349
    %2444 = vmatprep.subr.bf16.mxu0 0
    %2445 = vmatpush1.bf16.msra.mxu0 %v2350
    %2446 = vmatprep.subr.bf16.mxu0 0
    %2447 = vmatpush1.bf16.msra.mxu0 %v2351
    %2448 = vmatprep.subr.bf16.mxu0 0
    %2449 = vmatpush1.bf16.msra.mxu0 %v2352
    %2450 = vmatprep.subr.bf16.mxu0 0
    %2451 = vmatpush1.bf16.msra.mxu0 %v2353
    %2452 = vmatprep.subr.bf16.mxu0 0
    %2453 = vmatpush1.bf16.msra.mxu0 %v2354
    %2454 = vmatprep.subr.bf16.mxu0 0
    %2455 = vmatpush1.bf16.msra.mxu0 %v2355
    %2456 = vmatprep.subr.bf16.mxu0 0
    %2457 = vmatpush1.bf16.msra.mxu0 %v2356
    %2458 = vmatprep.subr.bf16.mxu0 0
    %2459 = vmatpush1.bf16.msra.mxu0 %v2357
    %2460 = vmatprep.subr.bf16.mxu0 0
    %2461 = vmatpush1.bf16.msra.mxu0 %v2358
    %2462 = vmatprep.subr.bf16.mxu0 0
    %2463 = vmatpush1.bf16.msra.mxu0 %v2359
    %2464 = vmatprep.mubr.bf16.mxu0 %v2128
    %2465 = vmatmul.mubr.bf16.gmra.mrb[0].mxu0 %v2127
    %v2466 = vpop.f32.mrb[0].mxu0
    %v2467 = vadd.f32 %v2427, %v2466
    %v2468 = vpop.f32.mrb[0].mxu0
    %v2469 = vpop.f32.mrb[0].mxu0
    %v2470 = vpop.f32.mrb[0].mxu0
    %2471 = vdwg.mxu0
    %2472 = vst [vmem:[#allocation8] sm:$0xff] %v2467
    // Predicated region
    $region50: #{tpu_custom_call.1} parent=1 // pred_check
      _
    $region51: #{tpu_custom_call.1} parent=1 // pred_check_branch
      %2474 = sbr.rel (0) target = $region53
    $region52: #{tpu_custom_call.1} parent=1 // pred_region
      %s2476 = ssub.s32 128, 128
      %2477 = vsyncadd [#allocation4], %s2476
      %s2479 = sshll.u32 [#allocation8], 4
      %s2480 = int_to_ptr.vmem [resolvable:$true] %s2479
      %2482 = dma.vmem_to_hbm [thread:$0]  %s2480, 128, %s9, [#allocation4]
    $region53: #{tpu_custom_call.1} parent=1 // pred_fallthru
      _
    // Predicated region
    $region54: #{tpu_custom_call.1} parent=1 // pred_check
      _
    $region55: #{tpu_custom_call.1} parent=1 // pred_check_branch
      %2484 = sbr.rel (0) target = $region57
    $region56: #{tpu_custom_call.1} parent=1 // pred_region
      %2485 = dma.done [#allocation4], 128
    $region57: #{tpu_custom_call.1} parent=1 // pred_fallthru
      _
    %2486 = vsyncpa [#allocation3], 1
    %2487 = vsyncpa [#allocation6], 1
    %2488 = vsyncpa [#allocation4], 1

</llo_original>
